<compile_context>
chip_gen: v7x
topology: tpu7x:2x2x1
jax: 0.10.0
libtpu: 0.0.40
codegen_flags: <defaults>
</compile_context>

<pallas_src>
import functools

import numpy as np
import jax
import jax.numpy as jnp
from jax.experimental import pallas as pl
from jax.experimental.pallas import tpu as pltpu


def _ceil_to(x, m):
    return -(-x // m) * m


# ---------------------------------------------------------------------------
# Kernel 1: fused Q/K/V projection, head-major outputs (BD, H, N, d).
#   grid = (BD,); each step reads one (N, d_model) slab of x ONCE and projects it
#   against every head's weight (weights are small and stay resident in VMEM).
# ---------------------------------------------------------------------------
def _qkv_proj_kernel(*refs, n_heads, n_x, op_dtype):
    x_refs = refs[:n_x]
    wq_ref, wk_ref, wv_ref = refs[n_x:n_x + 3]
    q_ref, k_ref, v_ref = refs[n_x + 3:]
    if n_x == 1:                                   # self-attention: one x read
        xq = xk = xv = x_refs[0][0].astype(op_dtype)
    else:                                          # cross-attention: three inputs
        xq, xk, xv = (r[0].astype(op_dtype) for r in x_refs)
    for h in range(n_heads):                       # static unroll, H is small
        q_ref[0, h] = jnp.dot(xq, wq_ref[h],
                              preferred_element_type=jnp.float32).astype(q_ref.dtype)
        k_ref[0, h] = jnp.dot(xk, wk_ref[h],
                              preferred_element_type=jnp.float32).astype(k_ref.dtype)
        v_ref[0, h] = jnp.dot(xv, wv_ref[h],
                              preferred_element_type=jnp.float32).astype(v_ref.dtype)


def _qkv_project(xs, wq_h, wk_h, wv_h, *, n_heads, d_k, d_v, op_dtype):
    n_x = len(xs)
    BD, N, d_model = xs[0].shape
    kernel = functools.partial(_qkv_proj_kernel, n_heads=n_heads, n_x=n_x,
                               op_dtype=op_dtype)
    x_specs = [pl.BlockSpec((1, N, d_model), lambda b: (b, 0, 0)) for _ in range(n_x)]
    w_specs = [pl.BlockSpec((n_heads, d_model, d_k), lambda b: (0, 0, 0)),
               pl.BlockSpec((n_heads, d_model, d_k), lambda b: (0, 0, 0)),
               pl.BlockSpec((n_heads, d_model, d_v), lambda b: (0, 0, 0))]
    return pl.pallas_call(
        kernel,
        out_shape=(jax.ShapeDtypeStruct((BD, n_heads, N, d_k), op_dtype),
                   jax.ShapeDtypeStruct((BD, n_heads, N, d_k), op_dtype),
                   jax.ShapeDtypeStruct((BD, n_heads, N, d_v), op_dtype)),
        grid=(BD,),
        in_specs=x_specs + w_specs,
        out_specs=(pl.BlockSpec((1, n_heads, N, d_k), lambda b: (b, 0, 0, 0)),
                   pl.BlockSpec((1, n_heads, N, d_k), lambda b: (b, 0, 0, 0)),
                   pl.BlockSpec((1, n_heads, N, d_v), lambda b: (b, 0, 0, 0))),
        compiler_params=pltpu.CompilerParams(dimension_semantics=("parallel",)),
    )(*xs, wq_h, wk_h, wv_h)


# ---------------------------------------------------------------------------
# Kernel 2: attention, one (batch*num_of_d, head) slab per grid step.
#   grid = (BD, H).  Blocks are full (N, d_k)/(N, N) slabs -> no lane slicing.
#   Softmax is over the QUERY axis (dim=3 of the 5-D tensor == axis 0 of the slab).
#   1/sqrt(d_k) already folded into W_Q.  res_att is aliased with the scores output.
# ---------------------------------------------------------------------------
def _attn_kernel(q_ref, k_ref, v_ref, res_ref, ctx_ref, sc_ref, *, approx_recip):
    q = q_ref[0, 0]                                  # (N, d_k)  bf16/f32
    k = k_ref[0, 0]                                  # (N, d_k)
    v = v_ref[0, 0]                                  # (N, d_v)
    # q @ k^T without an explicit transpose: contract last dims directly (MXU).
    s = jax.lax.dot_general(q, k, (((1,), (1,)), ((), ())),
                            preferred_element_type=jnp.float32)
    s = s + res_ref[0, 0].astype(jnp.float32)
    sc_ref[0, 0] = s.astype(sc_ref.dtype)            # res_attn (pre-softmax scores)
    # softmax over the query axis (axis 0 of this (Nq, Nk) slab) in f32
    m = jnp.max(s, axis=0, keepdims=True)
    e = jnp.exp(s - m)
    denom = jnp.sum(e, axis=0, keepdims=True)
    if approx_recip:
        attn = e * pl.reciprocal(denom, approx=True)  # EUP slot
    else:
        attn = e / denom
    ctx_ref[0, 0] = jnp.dot(attn.astype(v.dtype), v,
                            preferred_element_type=jnp.float32).astype(ctx_ref.dtype)


def _attn_vmem_limit_bytes(N, d_k, d_v, op_bytes, sc_bytes):
    """Raise the scoped VMEM limit only when the double-buffered blocks need it."""
    def tile(r, c, b):          # (8,128)-padded VMEM footprint of one block
        return _ceil_to(r, 8) * _ceil_to(c, 128) * b
    per_step = (2 * tile(N, d_k, op_bytes)        # q, k
                + 2 * tile(N, d_v, op_bytes)      # v, ctx
                + 2 * tile(N, N, sc_bytes))       # res in, scores out
    need = 2 * per_step + (4 << 20)               # double-buffered + slack
    if need <= (32 << 20):
        return None                               # default scoped limit is enough
    # TODO(synk): on v7x (64 MiB physical VMEM) tile the key axis instead of
    # raising the limit much past ~48 MiB.
    return min(int(need * 1.25), 100 << 20)


def _attention(q, k, v, res_flat, *, approx_recip, scores_dtype):
    BD, H, N, d_k = q.shape
    d_v = v.shape[-1]
    kernel = functools.partial(_attn_kernel, approx_recip=approx_recip)
    op_bytes = jnp.dtype(q.dtype).itemsize
    sc_bytes = jnp.dtype(scores_dtype).itemsize
    limit = _attn_vmem_limit_bytes(N, d_k, d_v, op_bytes, sc_bytes)
    # inputs: (q, k, v, res) ; outputs: (ctx, scores) -> alias res (3) with scores (1)
    io_alias = {3: 1} if res_flat.dtype == scores_dtype else {}
    return pl.pallas_call(
        kernel,
        out_shape=(jax.ShapeDtypeStruct((BD, H, N, d_v), q.dtype),
                   jax.ShapeDtypeStruct((BD, H, N, N), scores_dtype)),
        grid=(BD, H),
        in_specs=[pl.BlockSpec((1, 1, N, d_k), lambda b, h: (b, h, 0, 0)),
                  pl.BlockSpec((1, 1, N, d_k), lambda b, h: (b, h, 0, 0)),
                  pl.BlockSpec((1, 1, N, d_v), lambda b, h: (b, h, 0, 0)),
                  pl.BlockSpec((1, 1, N, N), lambda b, h: (b, h, 0, 0))],
        out_specs=(pl.BlockSpec((1, 1, N, d_v), lambda b, h: (b, h, 0, 0)),
                   pl.BlockSpec((1, 1, N, N), lambda b, h: (b, h, 0, 0))),
        input_output_aliases=io_alias,
        compiler_params=pltpu.CompilerParams(
            dimension_semantics=("parallel", "parallel"),
            vmem_limit_bytes=limit),
    )(q, k, v, res_flat)


# ---------------------------------------------------------------------------
# Kernel 3: output projection (fc, bias=False) + residual + LayerNorm(d_model).
#   grid = (BD,).  Consumes head-major context directly: fc(context) is the sum of
#   H small matmuls against (d_v, d_model) weight slabs -> no transpose anywhere,
#   lane-dense (N, d_model) output stores.  LN math in f32 (gamma=1, beta=0).
# ---------------------------------------------------------------------------
def _out_kernel(ctx_ref, wfc_ref, res_ref, o_ref, *, n_heads, eps):
    acc = res_ref[0].astype(jnp.float32)              # residual (N, d_model)
    for h in range(n_heads):                          # static unroll
        acc = acc + jnp.dot(ctx_ref[0, h], wfc_ref[h],
                            preferred_element_type=jnp.float32)
    mean = jnp.mean(acc, axis=-1, keepdims=True)
    var = jnp.mean(jnp.square(acc - mean), axis=-1, keepdims=True)
    o_ref[0] = ((acc - mean) * jax.lax.rsqrt(var + eps)).astype(o_ref.dtype)


def _fc_residual_layernorm(ctx, wfc_h, x3, *, n_heads, eps=1e-5):
    BD, H, N, d_v = ctx.shape
    d_model = wfc_h.shape[-1]
    kernel = functools.partial(_out_kernel, n_heads=n_heads, eps=eps)
    return pl.pallas_call(
        kernel,
        out_shape=jax.ShapeDtypeStruct((BD, N, d_model), jnp.float32),
        grid=(BD,),
        in_specs=[pl.BlockSpec((1, n_heads, N, d_v), lambda b: (b, 0, 0, 0)),
                  pl.BlockSpec((n_heads, d_v, d_model), lambda b: (0, 0, 0)),
                  pl.BlockSpec((1, N, d_model), lambda b: (b, 0, 0))],
        out_specs=pl.BlockSpec((1, N, d_model), lambda b: (b, 0, 0)),
        compiler_params=pltpu.CompilerParams(dimension_semantics=("parallel",)),
    )(ctx, wfc_h, x3)


# ---------------------------------------------------------------------------
# Full forward.  Wrapper does only contiguity-preserving reshapes plus the one-time
# head-major re-layout / bf16 cast of the (tiny) weights; all heavy compute in Pallas.
# ---------------------------------------------------------------------------
def multi_head_attention(x_q, x_k, x_v, res_att, params, *, d_k, d_v, n_heads,
                         attn_mask=None, use_bf16=True, approx_recip=True,
                         scores_dtype=jnp.float32):
    assert attn_mask is None  # TODO(synk): masked_fill(-1e9) path not supported.
    B, D, N, d_model = x_q.shape
    BD = B * D
    op_dtype = jnp.bfloat16 if use_bf16 else jnp.float32
    scale = 1.0 / float(np.sqrt(d_k))

    # nn.Linear weights stored transposed as (in, out); re-layout to head-major
    # (H, in, out_per_head) and fold 1/sqrt(d_k) into W_Q.  Cast to the MXU operand
    # dtype once here (weights are small; done once per call / per jit trace).
    wq_h = (params["wq_t"] * scale).reshape(d_model, n_heads, d_k)
    wq_h = jnp.transpose(wq_h, (1, 0, 2)).astype(op_dtype)
    wk_h = jnp.transpose(params["wk_t"].reshape(d_model, n_heads, d_k),
                         (1, 0, 2)).astype(op_dtype)
    wv_h = jnp.transpose(params["wv_t"].reshape(d_model, n_heads, d_v),
                         (1, 0, 2)).astype(op_dtype)
    wfc_h = params["wfc_t"].reshape(n_heads, d_v, d_model).astype(op_dtype)

    xq3 = x_q.reshape(BD, N, d_model)
    if (x_k is x_q) and (x_v is x_q):          # self-attention: read x once per slab
        xs = (xq3,)
    else:                                      # cross-attention fallback
        xs = (xq3, x_k.reshape(BD, N, d_model), x_v.reshape(BD, N, d_model))

    q, k, v = _qkv_project(xs, wq_h, wk_h, wv_h, n_heads=n_heads,
                           d_k=d_k, d_v=d_v, op_dtype=op_dtype)

    res_flat = res_att.reshape(BD, n_heads, N, N)
    if res_flat.dtype != scores_dtype:
        res_flat = res_flat.astype(scores_dtype)

    ctx, scores = _attention(q, k, v, res_flat, approx_recip=approx_recip,
                             scores_dtype=scores_dtype)

    out = _fc_residual_layernorm(ctx, wfc_h, xq3, n_heads=n_heads)
    out = out.reshape(B, D, N, d_model)
    res_attn = scores.reshape(B, D, n_heads, N, N)
    return out, res_attn


# ---------------------------------------------------------------------------
# Pure-JAX f32 reference (HIGHEST matmul precision) for correctness checks.
# ---------------------------------------------------------------------------
def _reference(x, res_att, params, *, d_k, d_v, n_heads):
    B, D, N, d_model = x.shape
    hp = jax.lax.Precision.HIGHEST

    def heads(w_t, dh):
        t = jnp.dot(x.reshape(B * D * N, d_model), w_t, precision=hp)
        return t.reshape(B, D, N, n_heads, dh).transpose(0, 1, 3, 2, 4)

    Q = heads(params["wq_t"], d_k)
    K = heads(params["wk_t"], d_k)
    V = heads(params["wv_t"], d_v)
    scores = jnp.einsum("bdhqe,bdhke->bdhqk", Q, K, precision=hp) / np.sqrt(d_k) + res_att
    attn = jax.nn.softmax(scores, axis=3)          # softmax over the QUERY axis
    ctx = jnp.einsum("bdhqk,bdhkv->bdhqv", attn, V, precision=hp)
    ctx = ctx.transpose(0, 1, 3, 2, 4).reshape(B * D * N, n_heads * d_v)
    y = jnp.dot(ctx, params["wfc_t"], precision=hp).reshape(B, D, N, d_model) + x
    mean = y.mean(-1, keepdims=True)
    var = ((y - mean) ** 2).mean(-1, keepdims=True)
    return (y - mean) / jnp.sqrt(var + 1e-5), scores


if __name__ == "__main__":
    # small shapes consistent with the module
    B, num_of_d, N = 2, 2, 16
    d_model, d_k, d_v, n_heads = 32, 8, 8, 4

    key = jax.random.PRNGKey(0)
    kx, kr, k1, k2, k3, k4 = jax.random.split(key, 6)

    x = jax.random.normal(kx, (B, num_of_d, N, d_model), dtype=jnp.float32)
    res_att = jax.random.normal(kr, (B, num_of_d, n_heads, N, N), dtype=jnp.float32) * 0.1

    # nn.Linear weights are (out, in); we store the transposed (in, out) matrices.
    def init_w(k, fan_in, fan_out):
        bound = 1.0 / np.sqrt(fan_in)
        return jax.random.uniform(k, (fan_in, fan_out), jnp.float32, -bound, bound)

    params = {
        "wq_t": init_w(k1, d_model, d_k * n_heads),
        "wk_t": init_w(k2, d_model, d_k * n_heads),
        "wv_t": init_w(k3, d_model, d_v * n_heads),
        "wfc_t": init_w(k4, n_heads * d_v, d_model),
    }

    def make_fwd(use_bf16, approx):
        @jax.jit
        def fwd(x_, res_, p_):
            # same array passed for Q/K/V -> self-attention fused projection path
            return multi_head_attention(
                x_, x_, x_, res_, p_, d_k=d_k, d_v=d_v, n_heads=n_heads,
                attn_mask=None, use_bf16=use_bf16, approx_recip=approx)
        return fwd

    ref_out, ref_scores = _reference(x, res_att, params,
                                     d_k=d_k, d_v=d_v, n_heads=n_heads)

    # Fast path: bf16 MXU operands + EUP approx reciprocal (loosened tolerances).
    out, res_attn = make_fwd(True, True)(x, res_att, params)
    out = jax.block_until_ready(out)
    res_attn = jax.block_until_ready(res_attn)
    assert out.shape == (B, num_of_d, N, d_model)
    assert res_attn.shape == (B, num_of_d, n_heads, N, N)
    np.testing.assert_allclose(np.asarray(out), np.asarray(ref_out),
                               rtol=5e-2, atol=5e-2)
    np.testing.assert_allclose(np.asarray(res_attn), np.asarray(ref_scores),
                               rtol=2e-2, atol=2e-2)

    # Exact path (f32 operands, exact divide) as a tight structural check.
    out_x, scores_x = make_fwd(False, False)(x, res_att, params)
    out_x = jax.block_until_ready(out_x)
    scores_x = jax.block_until_ready(scores_x)
    np.testing.assert_allclose(np.asarray(out_x), np.asarray(ref_out),
                               rtol=1e-3, atol=1e-3)
    np.testing.assert_allclose(np.asarray(scores_x), np.asarray(ref_scores),
                               rtol=1e-3, atol=1e-3)

    print("KERNEL_OK")
</pallas_src>

<mosaic_0001>
module attributes {stable_mosaic.version = 11 : i64} {
  func.func @_out_kernel(%arg0: i32, %arg1: memref<1x4x16x8xbf16, #tpu.memory_space<vmem>>, %arg2: memref<4x8x32xbf16, #tpu.memory_space<vmem>>, %arg3: memref<1x16x32xf32, #tpu.memory_space<vmem>>, %arg4: memref<1x16x32xf32, #tpu.memory_space<vmem>>) attributes {dimension_semantics = [#tpu.dimension_semantics<parallel>], iteration_bounds = array<i64: 4>, scalar_prefetch = 0 : i64, scratch_operands = 0 : i64, tpu.core_type = #tpu.core_type<tc>, window_params = [{transform_indices = @transform_0, window_bounds = array<i64: 1, 4, 16, 8>}, {pipeline_mode = #tpu.pipeline_mode<synchronous>, transform_indices = @transform_1, window_bounds = array<i64: 4, 8, 32>}, {transform_indices = @transform_2, window_bounds = array<i64: 1, 16, 32>}, {transform_indices = @transform_3, window_bounds = array<i64: 1, 16, 32>}]} {
    %c0 = arith.constant 0 : index
    %c0_0 = arith.constant 0 : index
    %c0_1 = arith.constant 0 : index
    %0 = vector.load %arg3[%c0, %c0_0, %c0_1] : memref<1x16x32xf32, #tpu.memory_space<vmem>>, vector<1x16x32xf32>
    %1 = vector.shape_cast %0 : vector<1x16x32xf32> to vector<16x32xf32>
    %c0_2 = arith.constant 0 : index
    %c0_3 = arith.constant 0 : index
    %c0_4 = arith.constant 0 : index
    %c0_5 = arith.constant 0 : index
    %2 = vector.load %arg1[%c0_2, %c0_3, %c0_4, %c0_5] : memref<1x4x16x8xbf16, #tpu.memory_space<vmem>>, vector<1x1x16x8xbf16>
    %3 = vector.shape_cast %2 : vector<1x1x16x8xbf16> to vector<16x8xbf16>
    %c0_6 = arith.constant 0 : index
    %c0_7 = arith.constant 0 : index
    %c0_8 = arith.constant 0 : index
    %4 = vector.load %arg2[%c0_6, %c0_7, %c0_8] : memref<4x8x32xbf16, #tpu.memory_space<vmem>>, vector<1x8x32xbf16>
    %5 = vector.shape_cast %4 : vector<1x8x32xbf16> to vector<8x32xbf16>
    %cst = arith.constant dense<0.000000e+00> : vector<16x32xf32>
    %6 = tpu.matmul %3, %5, %cst {dimension_numbers = #tpu.dot_dimension_numbers<[1], [0], [0], [1], [0, 0, 1, 1], [], []>} : vector<16x8xbf16>, vector<8x32xbf16>, vector<16x32xf32> -> vector<16x32xf32>
    %7 = arith.addf %1, %6 : vector<16x32xf32>
    %c0_9 = arith.constant 0 : index
    %c1 = arith.constant 1 : index
    %c0_10 = arith.constant 0 : index
    %c0_11 = arith.constant 0 : index
    %8 = vector.load %arg1[%c0_9, %c1, %c0_10, %c0_11] : memref<1x4x16x8xbf16, #tpu.memory_space<vmem>>, vector<1x1x16x8xbf16>
    %9 = vector.shape_cast %8 : vector<1x1x16x8xbf16> to vector<16x8xbf16>
    %c1_12 = arith.constant 1 : index
    %c0_13 = arith.constant 0 : index
    %c0_14 = arith.constant 0 : index
    %10 = vector.load %arg2[%c1_12, %c0_13, %c0_14] : memref<4x8x32xbf16, #tpu.memory_space<vmem>>, vector<1x8x32xbf16>
    %11 = vector.shape_cast %10 : vector<1x8x32xbf16> to vector<8x32xbf16>
    %cst_15 = arith.constant dense<0.000000e+00> : vector<16x32xf32>
    %12 = tpu.matmul %9, %11, %cst_15 {dimension_numbers = #tpu.dot_dimension_numbers<[1], [0], [0], [1], [0, 0, 1, 1], [], []>} : vector<16x8xbf16>, vector<8x32xbf16>, vector<16x32xf32> -> vector<16x32xf32>
    %13 = arith.addf %7, %12 : vector<16x32xf32>
    %c0_16 = arith.constant 0 : index
    %c2 = arith.constant 2 : index
    %c0_17 = arith.constant 0 : index
    %c0_18 = arith.constant 0 : index
    %14 = vector.load %arg1[%c0_16, %c2, %c0_17, %c0_18] : memref<1x4x16x8xbf16, #tpu.memory_space<vmem>>, vector<1x1x16x8xbf16>
    %15 = vector.shape_cast %14 : vector<1x1x16x8xbf16> to vector<16x8xbf16>
    %c2_19 = arith.constant 2 : index
    %c0_20 = arith.constant 0 : index
    %c0_21 = arith.constant 0 : index
    %16 = vector.load %arg2[%c2_19, %c0_20, %c0_21] : memref<4x8x32xbf16, #tpu.memory_space<vmem>>, vector<1x8x32xbf16>
    %17 = vector.shape_cast %16 : vector<1x8x32xbf16> to vector<8x32xbf16>
    %cst_22 = arith.constant dense<0.000000e+00> : vector<16x32xf32>
    %18 = tpu.matmul %15, %17, %cst_22 {dimension_numbers = #tpu.dot_dimension_numbers<[1], [0], [0], [1], [0, 0, 1, 1], [], []>} : vector<16x8xbf16>, vector<8x32xbf16>, vector<16x32xf32> -> vector<16x32xf32>
    %19 = arith.addf %13, %18 : vector<16x32xf32>
    %c0_23 = arith.constant 0 : index
    %c3 = arith.constant 3 : index
    %c0_24 = arith.constant 0 : index
    %c0_25 = arith.constant 0 : index
    %20 = vector.load %arg1[%c0_23, %c3, %c0_24, %c0_25] : memref<1x4x16x8xbf16, #tpu.memory_space<vmem>>, vector<1x1x16x8xbf16>
    %21 = vector.shape_cast %20 : vector<1x1x16x8xbf16> to vector<16x8xbf16>
    %c3_26 = arith.constant 3 : index
    %c0_27 = arith.constant 0 : index
    %c0_28 = arith.constant 0 : index
    %22 = vector.load %arg2[%c3_26, %c0_27, %c0_28] : memref<4x8x32xbf16, #tpu.memory_space<vmem>>, vector<1x8x32xbf16>
    %23 = vector.shape_cast %22 : vector<1x8x32xbf16> to vector<8x32xbf16>
    %cst_29 = arith.constant dense<0.000000e+00> : vector<16x32xf32>
    %24 = tpu.matmul %21, %23, %cst_29 {dimension_numbers = #tpu.dot_dimension_numbers<[1], [0], [0], [1], [0, 0, 1, 1], [], []>} : vector<16x8xbf16>, vector<8x32xbf16>, vector<16x32xf32> -> vector<16x32xf32>
    %25 = arith.addf %19, %24 : vector<16x32xf32>
    %cst_30 = arith.constant dense<0.000000e+00> : vector<16xf32>
    %26 = vector.multi_reduction <add>, %25, %cst_30 [1] : vector<16x32xf32> to vector<16xf32>
    %27 = vector.shape_cast %26 : vector<16xf32> to vector<16x1xf32>
    %cst_31 = arith.constant 3.200000e+01 : f32
    %28 = vector.broadcast %cst_31 : f32 to vector<16x1xf32>
    %29 = arith.divf %27, %28 : vector<16x1xf32>
    %30 = vector.broadcast %29 : vector<16x1xf32> to vector<16x32xf32>
    %31 = arith.subf %25, %30 : vector<16x32xf32>
    %32 = arith.mulf %31, %31 : vector<16x32xf32>
    %cst_32 = arith.constant dense<0.000000e+00> : vector<16xf32>
    %33 = vector.multi_reduction <add>, %32, %cst_32 [1] : vector<16x32xf32> to vector<16xf32>
    %34 = vector.shape_cast %33 : vector<16xf32> to vector<16x1xf32>
    %cst_33 = arith.constant 3.200000e+01 : f32
    %35 = vector.broadcast %cst_33 : f32 to vector<16x1xf32>
    %36 = arith.divf %34, %35 : vector<16x1xf32>
    %37 = vector.broadcast %29 : vector<16x1xf32> to vector<16x32xf32>
    %38 = arith.subf %25, %37 : vector<16x32xf32>
    %cst_34 = arith.constant 9.99999974E-6 : f32
    %39 = vector.broadcast %cst_34 : f32 to vector<16x1xf32>
    %40 = arith.addf %36, %39 : vector<16x1xf32>
    %41 = math.rsqrt %40 : vector<16x1xf32>
    %42 = vector.broadcast %41 : vector<16x1xf32> to vector<16x32xf32>
    %43 = arith.mulf %38, %42 : vector<16x32xf32>
    %c0_35 = arith.constant 0 : index
    %c0_36 = arith.constant 0 : index
    %c0_37 = arith.constant 0 : index
    %44 = vector.load %arg4[%c0_35, %c0_36, %c0_37] : memref<1x16x32xf32, #tpu.memory_space<vmem>>, vector<1x16x32xf32>
    %45 = vector.shape_cast %44 : vector<1x16x32xf32> to vector<16x32xf32>
    %46 = vector.shape_cast %43 : vector<16x32xf32> to vector<1x16x32xf32>
    tpu.vector_store %arg4[%c0_35, %c0_36, %c0_37], %46 {strides = array<i32>} : memref<1x16x32xf32, #tpu.memory_space<vmem>>, vector<1x16x32xf32>,
    return
  }
  func.func @transform_0(%arg0: i32) -> (i32, i32, i32, i32) {
    %c0_i32 = arith.constant 0 : i32
    %c0_i32_0 = arith.constant 0 : i32
    %c0_i32_1 = arith.constant 0 : i32
    %c0_i32_2 = arith.constant 0 : i32
    return %arg0, %c0_i32, %c0_i32_0, %c0_i32_1 : i32, i32, i32, i32
  }
  func.func @transform_1(%arg0: i32) -> (i32, i32, i32) {
    %c0_i32 = arith.constant 0 : i32
    %c0_i32_0 = arith.constant 0 : i32
    %c0_i32_1 = arith.constant 0 : i32
    %c0_i32_2 = arith.constant 0 : i32
    return %c0_i32, %c0_i32_0, %c0_i32_1 : i32, i32, i32
  }
  func.func @transform_2(%arg0: i32) -> (i32, i32, i32) {
    %c0_i32 = arith.constant 0 : i32
    %c0_i32_0 = arith.constant 0 : i32
    %c0_i32_1 = arith.constant 0 : i32
    return %arg0, %c0_i32, %c0_i32_0 : i32, i32, i32
  }
  func.func @transform_3(%arg0: i32) -> (i32, i32, i32) {
    %c0_i32 = arith.constant 0 : i32
    %c0_i32_0 = arith.constant 0 : i32
    %c0_i32_1 = arith.constant 0 : i32
    return %arg0, %c0_i32, %c0_i32_0 : i32, i32, i32
  }
}

module attributes {stable_mosaic.version = 11 : i64} {
  func.func @_qkv_proj_kernel(%arg0: i32, %arg1: memref<1x16x32xf32, #tpu.memory_space<vmem>>, %arg2: memref<4x32x8xbf16, #tpu.memory_space<vmem>>, %arg3: memref<4x32x8xbf16, #tpu.memory_space<vmem>>, %arg4: memref<4x32x8xbf16, #tpu.memory_space<vmem>>, %arg5: memref<1x4x16x8xbf16, #tpu.memory_space<vmem>>, %arg6: memref<1x4x16x8xbf16, #tpu.memory_space<vmem>>, %arg7: memref<1x4x16x8xbf16, #tpu.memory_space<vmem>>) attributes {dimension_semantics = [#tpu.dimension_semantics<parallel>], iteration_bounds = array<i64: 4>, scalar_prefetch = 0 : i64, scratch_operands = 0 : i64, tpu.core_type = #tpu.core_type<tc>, window_params = [{transform_indices = @transform_0, window_bounds = array<i64: 1, 16, 32>}, {pipeline_mode = #tpu.pipeline_mode<synchronous>, transform_indices = @transform_1, window_bounds = array<i64: 4, 32, 8>}, {pipeline_mode = #tpu.pipeline_mode<synchronous>, transform_indices = @transform_2, window_bounds = array<i64: 4, 32, 8>}, {pipeline_mode = #tpu.pipeline_mode<synchronous>, transform_indices = @transform_3, window_bounds = array<i64: 4, 32, 8>}, {transform_indices = @transform_4, window_bounds = array<i64: 1, 4, 16, 8>}, {transform_indices = @transform_5, window_bounds = array<i64: 1, 4, 16, 8>}, {transform_indices = @transform_6, window_bounds = array<i64: 1, 4, 16, 8>}]} {
    %c0 = arith.constant 0 : index
    %c0_0 = arith.constant 0 : index
    %c0_1 = arith.constant 0 : index
    %0 = vector.load %arg1[%c0, %c0_0, %c0_1] : memref<1x16x32xf32, #tpu.memory_space<vmem>>, vector<1x16x32xf32>
    %1 = vector.shape_cast %0 : vector<1x16x32xf32> to vector<16x32xf32>
    %2 = arith.truncf %1 : vector<16x32xf32> to vector<16x32xbf16>
    %c0_2 = arith.constant 0 : index
    %c0_3 = arith.constant 0 : index
    %c0_4 = arith.constant 0 : index
    %3 = vector.load %arg2[%c0_2, %c0_3, %c0_4] : memref<4x32x8xbf16, #tpu.memory_space<vmem>>, vector<1x32x8xbf16>
    %4 = vector.shape_cast %3 : vector<1x32x8xbf16> to vector<32x8xbf16>
    %cst = arith.constant dense<0.000000e+00> : vector<16x8xf32>
    %5 = tpu.matmul %2, %4, %cst {dimension_numbers = #tpu.dot_dimension_numbers<[1], [0], [0], [1], [0, 0, 1, 1], [], []>} : vector<16x32xbf16>, vector<32x8xbf16>, vector<16x8xf32> -> vector<16x8xf32>
    %6 = arith.truncf %5 : vector<16x8xf32> to vector<16x8xbf16>
    %c0_5 = arith.constant 0 : index
    %c0_6 = arith.constant 0 : index
    %c0_7 = arith.constant 0 : index
    %c0_8 = arith.constant 0 : index
    %7 = vector.load %arg5[%c0_5, %c0_6, %c0_7, %c0_8] : memref<1x4x16x8xbf16, #tpu.memory_space<vmem>>, vector<1x1x16x8xbf16>
    %8 = vector.shape_cast %7 : vector<1x1x16x8xbf16> to vector<16x8xbf16>
    %9 = vector.shape_cast %6 : vector<16x8xbf16> to vector<1x1x16x8xbf16>
    tpu.vector_store %arg5[%c0_5, %c0_6, %c0_7, %c0_8], %9 {strides = array<i32>} : memref<1x4x16x8xbf16, #tpu.memory_space<vmem>>, vector<1x1x16x8xbf16>,
    %c0_9 = arith.constant 0 : index
    %c0_10 = arith.constant 0 : index
    %c0_11 = arith.constant 0 : index
    %10 = vector.load %arg3[%c0_9, %c0_10, %c0_11] : memref<4x32x8xbf16, #tpu.memory_space<vmem>>, vector<1x32x8xbf16>
    %11 = vector.shape_cast %10 : vector<1x32x8xbf16> to vector<32x8xbf16>
    %cst_12 = arith.constant dense<0.000000e+00> : vector<16x8xf32>
    %12 = tpu.matmul %2, %11, %cst_12 {dimension_numbers = #tpu.dot_dimension_numbers<[1], [0], [0], [1], [0, 0, 1, 1], [], []>} : vector<16x32xbf16>, vector<32x8xbf16>, vector<16x8xf32> -> vector<16x8xf32>
    %13 = arith.truncf %12 : vector<16x8xf32> to vector<16x8xbf16>
    %c0_13 = arith.constant 0 : index
    %c0_14 = arith.constant 0 : index
    %c0_15 = arith.constant 0 : index
    %c0_16 = arith.constant 0 : index
    %14 = vector.load %arg6[%c0_13, %c0_14, %c0_15, %c0_16] : memref<1x4x16x8xbf16, #tpu.memory_space<vmem>>, vector<1x1x16x8xbf16>
    %15 = vector.shape_cast %14 : vector<1x1x16x8xbf16> to vector<16x8xbf16>
    %16 = vector.shape_cast %13 : vector<16x8xbf16> to vector<1x1x16x8xbf16>
    tpu.vector_store %arg6[%c0_13, %c0_14, %c0_15, %c0_16], %16 {strides = array<i32>} : memref<1x4x16x8xbf16, #tpu.memory_space<vmem>>, vector<1x1x16x8xbf16>,
    %c0_17 = arith.constant 0 : index
    %c0_18 = arith.constant 0 : index
    %c0_19 = arith.constant 0 : index
    %17 = vector.load %arg4[%c0_17, %c0_18, %c0_19] : memref<4x32x8xbf16, #tpu.memory_space<vmem>>, vector<1x32x8xbf16>
    %18 = vector.shape_cast %17 : vector<1x32x8xbf16> to vector<32x8xbf16>
    %cst_20 = arith.constant dense<0.000000e+00> : vector<16x8xf32>
    %19 = tpu.matmul %2, %18, %cst_20 {dimension_numbers = #tpu.dot_dimension_numbers<[1], [0], [0], [1], [0, 0, 1, 1], [], []>} : vector<16x32xbf16>, vector<32x8xbf16>, vector<16x8xf32> -> vector<16x8xf32>
    %20 = arith.truncf %19 : vector<16x8xf32> to vector<16x8xbf16>
    %c0_21 = arith.constant 0 : index
    %c0_22 = arith.constant 0 : index
    %c0_23 = arith.constant 0 : index
    %c0_24 = arith.constant 0 : index
    %21 = vector.load %arg7[%c0_21, %c0_22, %c0_23, %c0_24] : memref<1x4x16x8xbf16, #tpu.memory_space<vmem>>, vector<1x1x16x8xbf16>
    %22 = vector.shape_cast %21 : vector<1x1x16x8xbf16> to vector<16x8xbf16>
    %23 = vector.shape_cast %20 : vector<16x8xbf16> to vector<1x1x16x8xbf16>
    tpu.vector_store %arg7[%c0_21, %c0_22, %c0_23, %c0_24], %23 {strides = array<i32>} : memref<1x4x16x8xbf16, #tpu.memory_space<vmem>>, vector<1x1x16x8xbf16>,
    %c1 = arith.constant 1 : index
    %c0_25 = arith.constant 0 : index
    %c0_26 = arith.constant 0 : index
    %24 = vector.load %arg2[%c1, %c0_25, %c0_26] : memref<4x32x8xbf16, #tpu.memory_space<vmem>>, vector<1x32x8xbf16>
    %25 = vector.shape_cast %24 : vector<1x32x8xbf16> to vector<32x8xbf16>
    %cst_27 = arith.constant dense<0.000000e+00> : vector<16x8xf32>
    %26 = tpu.matmul %2, %25, %cst_27 {dimension_numbers = #tpu.dot_dimension_numbers<[1], [0], [0], [1], [0, 0, 1, 1], [], []>} : vector<16x32xbf16>, vector<32x8xbf16>, vector<16x8xf32> -> vector<16x8xf32>
    %27 = arith.truncf %26 : vector<16x8xf32> to vector<16x8xbf16>
    %c0_28 = arith.constant 0 : index
    %c1_29 = arith.constant 1 : index
    %c0_30 = arith.constant 0 : index
    %c0_31 = arith.constant 0 : index
    %28 = vector.load %arg5[%c0_28, %c1_29, %c0_30, %c0_31] : memref<1x4x16x8xbf16, #tpu.memory_space<vmem>>, vector<1x1x16x8xbf16>
    %29 = vector.shape_cast %28 : vector<1x1x16x8xbf16> to vector<16x8xbf16>
    %30 = vector.shape_cast %27 : vector<16x8xbf16> to vector<1x1x16x8xbf16>
    tpu.vector_store %arg5[%c0_28, %c1_29, %c0_30, %c0_31], %30 {strides = array<i32>} : memref<1x4x16x8xbf16, #tpu.memory_space<vmem>>, vector<1x1x16x8xbf16>,
    %c1_32 = arith.constant 1 : index
    %c0_33 = arith.constant 0 : index
    %c0_34 = arith.constant 0 : index
    %31 = vector.load %arg3[%c1_32, %c0_33, %c0_34] : memref<4x32x8xbf16, #tpu.memory_space<vmem>>, vector<1x32x8xbf16>
    %32 = vector.shape_cast %31 : vector<1x32x8xbf16> to vector<32x8xbf16>
    %cst_35 = arith.constant dense<0.000000e+00> : vector<16x8xf32>
    %33 = tpu.matmul %2, %32, %cst_35 {dimension_numbers = #tpu.dot_dimension_numbers<[1], [0], [0], [1], [0, 0, 1, 1], [], []>} : vector<16x32xbf16>, vector<32x8xbf16>, vector<16x8xf32> -> vector<16x8xf32>
    %34 = arith.truncf %33 : vector<16x8xf32> to vector<16x8xbf16>
    %c0_36 = arith.constant 0 : index
    %c1_37 = arith.constant 1 : index
    %c0_38 = arith.constant 0 : index
    %c0_39 = arith.constant 0 : index
    %35 = vector.load %arg6[%c0_36, %c1_37, %c0_38, %c0_39] : memref<1x4x16x8xbf16, #tpu.memory_space<vmem>>, vector<1x1x16x8xbf16>
    %36 = vector.shape_cast %35 : vector<1x1x16x8xbf16> to vector<16x8xbf16>
    %37 = vector.shape_cast %34 : vector<16x8xbf16> to vector<1x1x16x8xbf16>
    tpu.vector_store %arg6[%c0_36, %c1_37, %c0_38, %c0_39], %37 {strides = array<i32>} : memref<1x4x16x8xbf16, #tpu.memory_space<vmem>>, vector<1x1x16x8xbf16>,
    %c1_40 = arith.constant 1 : index
    %c0_41 = arith.constant 0 : index
    %c0_42 = arith.constant 0 : index
    %38 = vector.load %arg4[%c1_40, %c0_41, %c0_42] : memref<4x32x8xbf16, #tpu.memory_space<vmem>>, vector<1x32x8xbf16>
    %39 = vector.shape_cast %38 : vector<1x32x8xbf16> to vector<32x8xbf16>
    %cst_43 = arith.constant dense<0.000000e+00> : vector<16x8xf32>
    %40 = tpu.matmul %2, %39, %cst_43 {dimension_numbers = #tpu.dot_dimension_numbers<[1], [0], [0], [1], [0, 0, 1, 1], [], []>} : vector<16x32xbf16>, vector<32x8xbf16>, vector<16x8xf32> -> vector<16x8xf32>
    %41 = arith.truncf %40 : vector<16x8xf32> to vector<16x8xbf16>
    %c0_44 = arith.constant 0 : index
    %c1_45 = arith.constant 1 : index
    %c0_46 = arith.constant 0 : index
    %c0_47 = arith.constant 0 : index
    %42 = vector.load %arg7[%c0_44, %c1_45, %c0_46, %c0_47] : memref<1x4x16x8xbf16, #tpu.memory_space<vmem>>, vector<1x1x16x8xbf16>
    %43 = vector.shape_cast %42 : vector<1x1x16x8xbf16> to vector<16x8xbf16>
    %44 = vector.shape_cast %41 : vector<16x8xbf16> to vector<1x1x16x8xbf16>
    tpu.vector_store %arg7[%c0_44, %c1_45, %c0_46, %c0_47], %44 {strides = array<i32>} : memref<1x4x16x8xbf16, #tpu.memory_space<vmem>>, vector<1x1x16x8xbf16>,
    %c2 = arith.constant 2 : index
    %c0_48 = arith.constant 0 : index
    %c0_49 = arith.constant 0 : index
    %45 = vector.load %arg2[%c2, %c0_48, %c0_49] : memref<4x32x8xbf16, #tpu.memory_space<vmem>>, vector<1x32x8xbf16>
    %46 = vector.shape_cast %45 : vector<1x32x8xbf16> to vector<32x8xbf16>
    %cst_50 = arith.constant dense<0.000000e+00> : vector<16x8xf32>
    %47 = tpu.matmul %2, %46, %cst_50 {dimension_numbers = #tpu.dot_dimension_numbers<[1], [0], [0], [1], [0, 0, 1, 1], [], []>} : vector<16x32xbf16>, vector<32x8xbf16>, vector<16x8xf32> -> vector<16x8xf32>
    %48 = arith.truncf %47 : vector<16x8xf32> to vector<16x8xbf16>
    %c0_51 = arith.constant 0 : index
    %c2_52 = arith.constant 2 : index
    %c0_53 = arith.constant 0 : index
    %c0_54 = arith.constant 0 : index
    %49 = vector.load %arg5[%c0_51, %c2_52, %c0_53, %c0_54] : memref<1x4x16x8xbf16, #tpu.memory_space<vmem>>, vector<1x1x16x8xbf16>
    %50 = vector.shape_cast %49 : vector<1x1x16x8xbf16> to vector<16x8xbf16>
    %51 = vector.shape_cast %48 : vector<16x8xbf16> to vector<1x1x16x8xbf16>
    tpu.vector_store %arg5[%c0_51, %c2_52, %c0_53, %c0_54], %51 {strides = array<i32>} : memref<1x4x16x8xbf16, #tpu.memory_space<vmem>>, vector<1x1x16x8xbf16>,
    %c2_55 = arith.constant 2 : index
    %c0_56 = arith.constant 0 : index
    %c0_57 = arith.constant 0 : index
    %52 = vector.load %arg3[%c2_55, %c0_56, %c0_57] : memref<4x32x8xbf16, #tpu.memory_space<vmem>>, vector<1x32x8xbf16>
    %53 = vector.shape_cast %52 : vector<1x32x8xbf16> to vector<32x8xbf16>
    %cst_58 = arith.constant dense<0.000000e+00> : vector<16x8xf32>
    %54 = tpu.matmul %2, %53, %cst_58 {dimension_numbers = #tpu.dot_dimension_numbers<[1], [0], [0], [1], [0, 0, 1, 1], [], []>} : vector<16x32xbf16>, vector<32x8xbf16>, vector<16x8xf32> -> vector<16x8xf32>
    %55 = arith.truncf %54 : vector<16x8xf32> to vector<16x8xbf16>
    %c0_59 = arith.constant 0 : index
    %c2_60 = arith.constant 2 : index
    %c0_61 = arith.constant 0 : index
    %c0_62 = arith.constant 0 : index
    %56 = vector.load %arg6[%c0_59, %c2_60, %c0_61, %c0_62] : memref<1x4x16x8xbf16, #tpu.memory_space<vmem>>, vector<1x1x16x8xbf16>
    %57 = vector.shape_cast %56 : vector<1x1x16x8xbf16> to vector<16x8xbf16>
    %58 = vector.shape_cast %55 : vector<16x8xbf16> to vector<1x1x16x8xbf16>
    tpu.vector_store %arg6[%c0_59, %c2_60, %c0_61, %c0_62], %58 {strides = array<i32>} : memref<1x4x16x8xbf16, #tpu.memory_space<vmem>>, vector<1x1x16x8xbf16>,
    %c2_63 = arith.constant 2 : index
    %c0_64 = arith.constant 0 : index
    %c0_65 = arith.constant 0 : index
    %59 = vector.load %arg4[%c2_63, %c0_64, %c0_65] : memref<4x32x8xbf16, #tpu.memory_space<vmem>>, vector<1x32x8xbf16>
    %60 = vector.shape_cast %59 : vector<1x32x8xbf16> to vector<32x8xbf16>
    %cst_66 = arith.constant dense<0.000000e+00> : vector<16x8xf32>
    %61 = tpu.matmul %2, %60, %cst_66 {dimension_numbers = #tpu.dot_dimension_numbers<[1], [0], [0], [1], [0, 0, 1, 1], [], []>} : vector<16x32xbf16>, vector<32x8xbf16>, vector<16x8xf32> -> vector<16x8xf32>
    %62 = arith.truncf %61 : vector<16x8xf32> to vector<16x8xbf16>
    %c0_67 = arith.constant 0 : index
    %c2_68 = arith.constant 2 : index
    %c0_69 = arith.constant 0 : index
    %c0_70 = arith.constant 0 : index
    %63 = vector.load %arg7[%c0_67, %c2_68, %c0_69, %c0_70] : memref<1x4x16x8xbf16, #tpu.memory_space<vmem>>, vector<1x1x16x8xbf16>
    %64 = vector.shape_cast %63 : vector<1x1x16x8xbf16> to vector<16x8xbf16>
    %65 = vector.shape_cast %62 : vector<16x8xbf16> to vector<1x1x16x8xbf16>
    tpu.vector_store %arg7[%c0_67, %c2_68, %c0_69, %c0_70], %65 {strides = array<i32>} : memref<1x4x16x8xbf16, #tpu.memory_space<vmem>>, vector<1x1x16x8xbf16>,
    %c3 = arith.constant 3 : index
    %c0_71 = arith.constant 0 : index
    %c0_72 = arith.constant 0 : index
    %66 = vector.load %arg2[%c3, %c0_71, %c0_72] : memref<4x32x8xbf16, #tpu.memory_space<vmem>>, vector<1x32x8xbf16>
    %67 = vector.shape_cast %66 : vector<1x32x8xbf16> to vector<32x8xbf16>
    %cst_73 = arith.constant dense<0.000000e+00> : vector<16x8xf32>
    %68 = tpu.matmul %2, %67, %cst_73 {dimension_numbers = #tpu.dot_dimension_numbers<[1], [0], [0], [1], [0, 0, 1, 1], [], []>} : vector<16x32xbf16>, vector<32x8xbf16>, vector<16x8xf32> -> vector<16x8xf32>
    %69 = arith.truncf %68 : vector<16x8xf32> to vector<16x8xbf16>
    %c0_74 = arith.constant 0 : index
    %c3_75 = arith.constant 3 : index
    %c0_76 = arith.constant 0 : index
    %c0_77 = arith.constant 0 : index
    %70 = vector.load %arg5[%c0_74, %c3_75, %c0_76, %c0_77] : memref<1x4x16x8xbf16, #tpu.memory_space<vmem>>, vector<1x1x16x8xbf16>
    %71 = vector.shape_cast %70 : vector<1x1x16x8xbf16> to vector<16x8xbf16>
    %72 = vector.shape_cast %69 : vector<16x8xbf16> to vector<1x1x16x8xbf16>
    tpu.vector_store %arg5[%c0_74, %c3_75, %c0_76, %c0_77], %72 {strides = array<i32>} : memref<1x4x16x8xbf16, #tpu.memory_space<vmem>>, vector<1x1x16x8xbf16>,
    %c3_78 = arith.constant 3 : index
    %c0_79 = arith.constant 0 : index
    %c0_80 = arith.constant 0 : index
    %73 = vector.load %arg3[%c3_78, %c0_79, %c0_80] : memref<4x32x8xbf16, #tpu.memory_space<vmem>>, vector<1x32x8xbf16>
    %74 = vector.shape_cast %73 : vector<1x32x8xbf16> to vector<32x8xbf16>
    %cst_81 = arith.constant dense<0.000000e+00> : vector<16x8xf32>
    %75 = tpu.matmul %2, %74, %cst_81 {dimension_numbers = #tpu.dot_dimension_numbers<[1], [0], [0], [1], [0, 0, 1, 1], [], []>} : vector<16x32xbf16>, vector<32x8xbf16>, vector<16x8xf32> -> vector<16x8xf32>
    %76 = arith.truncf %75 : vector<16x8xf32> to vector<16x8xbf16>
    %c0_82 = arith.constant 0 : index
    %c3_83 = arith.constant 3 : index
    %c0_84 = arith.constant 0 : index
    %c0_85 = arith.constant 0 : index
    %77 = vector.load %arg6[%c0_82, %c3_83, %c0_84, %c0_85] : memref<1x4x16x8xbf16, #tpu.memory_space<vmem>>, vector<1x1x16x8xbf16>
    %78 = vector.shape_cast %77 : vector<1x1x16x8xbf16> to vector<16x8xbf16>
    %79 = vector.shape_cast %76 : vector<16x8xbf16> to vector<1x1x16x8xbf16>
    tpu.vector_store %arg6[%c0_82, %c3_83, %c0_84, %c0_85], %79 {strides = array<i32>} : memref<1x4x16x8xbf16, #tpu.memory_space<vmem>>, vector<1x1x16x8xbf16>,
    %c3_86 = arith.constant 3 : index
    %c0_87 = arith.constant 0 : index
    %c0_88 = arith.constant 0 : index
    %80 = vector.load %arg4[%c3_86, %c0_87, %c0_88] : memref<4x32x8xbf16, #tpu.memory_space<vmem>>, vector<1x32x8xbf16>
    %81 = vector.shape_cast %80 : vector<1x32x8xbf16> to vector<32x8xbf16>
    %cst_89 = arith.constant dense<0.000000e+00> : vector<16x8xf32>
    %82 = tpu.matmul %2, %81, %cst_89 {dimension_numbers = #tpu.dot_dimension_numbers<[1], [0], [0], [1], [0, 0, 1, 1], [], []>} : vector<16x32xbf16>, vector<32x8xbf16>, vector<16x8xf32> -> vector<16x8xf32>
    %83 = arith.truncf %82 : vector<16x8xf32> to vector<16x8xbf16>
    %c0_90 = arith.constant 0 : index
    %c3_91 = arith.constant 3 : index
    %c0_92 = arith.constant 0 : index
    %c0_93 = arith.constant 0 : index
    %84 = vector.load %arg7[%c0_90, %c3_91, %c0_92, %c0_93] : memref<1x4x16x8xbf16, #tpu.memory_space<vmem>>, vector<1x1x16x8xbf16>
    %85 = vector.shape_cast %84 : vector<1x1x16x8xbf16> to vector<16x8xbf16>
    %86 = vector.shape_cast %83 : vector<16x8xbf16> to vector<1x1x16x8xbf16>
    tpu.vector_store %arg7[%c0_90, %c3_91, %c0_92, %c0_93], %86 {strides = array<i32>} : memref<1x4x16x8xbf16, #tpu.memory_space<vmem>>, vector<1x1x16x8xbf16>,
    return
  }
  func.func @transform_0(%arg0: i32) -> (i32, i32, i32) {
    %c0_i32 = arith.constant 0 : i32
    %c0_i32_0 = arith.constant 0 : i32
    %c0_i32_1 = arith.constant 0 : i32
    return %arg0, %c0_i32, %c0_i32_0 : i32, i32, i32
  }
  func.func @transform_1(%arg0: i32) -> (i32, i32, i32) {
    %c0_i32 = arith.constant 0 : i32
    %c0_i32_0 = arith.constant 0 : i32
    %c0_i32_1 = arith.constant 0 : i32
    %c0_i32_2 = arith.constant 0 : i32
    return %c0_i32, %c0_i32_0, %c0_i32_1 : i32, i32, i32
  }
  func.func @transform_2(%arg0: i32) -> (i32, i32, i32) {
    %c0_i32 = arith.constant 0 : i32
    %c0_i32_0 = arith.constant 0 : i32
    %c0_i32_1 = arith.constant 0 : i32
    %c0_i32_2 = arith.constant 0 : i32
    return %c0_i32, %c0_i32_0, %c0_i32_1 : i32, i32, i32
  }
  func.func @transform_3(%arg0: i32) -> (i32, i32, i32) {
    %c0_i32 = arith.constant 0 : i32
    %c0_i32_0 = arith.constant 0 : i32
    %c0_i32_1 = arith.constant 0 : i32
    %c0_i32_2 = arith.constant 0 : i32
    return %c0_i32, %c0_i32_0, %c0_i32_1 : i32, i32, i32
  }
  func.func @transform_4(%arg0: i32) -> (i32, i32, i32, i32) {
    %c0_i32 = arith.constant 0 : i32
    %c0_i32_0 = arith.constant 0 : i32
    %c0_i32_1 = arith.constant 0 : i32
    %c0_i32_2 = arith.constant 0 : i32
    return %arg0, %c0_i32, %c0_i32_0, %c0_i32_1 : i32, i32, i32, i32
  }
  func.func @transform_5(%arg0: i32) -> (i32, i32, i32, i32) {
    %c0_i32 = arith.constant 0 : i32
    %c0_i32_0 = arith.constant 0 : i32
    %c0_i32_1 = arith.constant 0 : i32
    %c0_i32_2 = arith.constant 0 : i32
    return %arg0, %c0_i32, %c0_i32_0, %c0_i32_1 : i32, i32, i32, i32
  }
  func.func @transform_6(%arg0: i32) -> (i32, i32, i32, i32) {
    %c0_i32 = arith.constant 0 : i32
    %c0_i32_0 = arith.constant 0 : i32
    %c0_i32_1 = arith.constant 0 : i32
    %c0_i32_2 = arith.constant 0 : i32
    return %arg0, %c0_i32, %c0_i32_0, %c0_i32_1 : i32, i32, i32, i32
  }
}

module attributes {stable_mosaic.version = 11 : i64} {
  func.func @_attn_kernel(%arg0: i32, %arg1: i32, %arg2: memref<1x1x16x8xbf16, #tpu.memory_space<vmem>>, %arg3: memref<1x1x16x8xbf16, #tpu.memory_space<vmem>>, %arg4: memref<1x1x16x8xbf16, #tpu.memory_space<vmem>>, %arg5: memref<1x1x16x16xf32, #tpu.memory_space<vmem>>, %arg6: memref<1x1x16x8xbf16, #tpu.memory_space<vmem>>, %arg7: memref<1x1x16x16xf32, #tpu.memory_space<vmem>>) attributes {dimension_semantics = [#tpu.dimension_semantics<parallel>, #tpu.dimension_semantics<parallel>], iteration_bounds = array<i64: 4, 4>, scalar_prefetch = 0 : i64, scratch_operands = 0 : i64, tpu.core_type = #tpu.core_type<tc>, window_params = [{transform_indices = @transform_0, window_bounds = array<i64: 1, 1, 16, 8>}, {transform_indices = @transform_1, window_bounds = array<i64: 1, 1, 16, 8>}, {transform_indices = @transform_2, window_bounds = array<i64: 1, 1, 16, 8>}, {transform_indices = @transform_3, window_bounds = array<i64: 1, 1, 16, 16>}, {transform_indices = @transform_4, window_bounds = array<i64: 1, 1, 16, 8>}, {transform_indices = @transform_5, window_bounds = array<i64: 1, 1, 16, 16>}]} {
    %c0 = arith.constant 0 : index
    %c0_0 = arith.constant 0 : index
    %c0_1 = arith.constant 0 : index
    %c0_2 = arith.constant 0 : index
    %0 = vector.load %arg2[%c0, %c0_0, %c0_1, %c0_2] : memref<1x1x16x8xbf16, #tpu.memory_space<vmem>>, vector<1x1x16x8xbf16>
    %1 = vector.shape_cast %0 : vector<1x1x16x8xbf16> to vector<16x8xbf16>
    %c0_3 = arith.constant 0 : index
    %c0_4 = arith.constant 0 : index
    %c0_5 = arith.constant 0 : index
    %c0_6 = arith.constant 0 : index
    %2 = vector.load %arg3[%c0_3, %c0_4, %c0_5, %c0_6] : memref<1x1x16x8xbf16, #tpu.memory_space<vmem>>, vector<1x1x16x8xbf16>
    %3 = vector.shape_cast %2 : vector<1x1x16x8xbf16> to vector<16x8xbf16>
    %c0_7 = arith.constant 0 : index
    %c0_8 = arith.constant 0 : index
    %c0_9 = arith.constant 0 : index
    %c0_10 = arith.constant 0 : index
    %4 = vector.load %arg4[%c0_7, %c0_8, %c0_9, %c0_10] : memref<1x1x16x8xbf16, #tpu.memory_space<vmem>>, vector<1x1x16x8xbf16>
    %5 = vector.shape_cast %4 : vector<1x1x16x8xbf16> to vector<16x8xbf16>
    %cst = arith.constant dense<0.000000e+00> : vector<16x16xf32>
    %6 = tpu.matmul %1, %3, %cst {dimension_numbers = #tpu.dot_dimension_numbers<[1], [1], [0], [0], [0, 0, 1, 0], [], []>} : vector<16x8xbf16>, vector<16x8xbf16>, vector<16x16xf32> -> vector<16x16xf32>
    %c0_11 = arith.constant 0 : index
    %c0_12 = arith.constant 0 : index
    %c0_13 = arith.constant 0 : index
    %c0_14 = arith.constant 0 : index
    %7 = vector.load %arg5[%c0_11, %c0_12, %c0_13, %c0_14] : memref<1x1x16x16xf32, #tpu.memory_space<vmem>>, vector<1x1x16x16xf32>
    %8 = vector.shape_cast %7 : vector<1x1x16x16xf32> to vector<16x16xf32>
    %9 = arith.addf %6, %8 : vector<16x16xf32>
    %c0_15 = arith.constant 0 : index
    %c0_16 = arith.constant 0 : index
    %c0_17 = arith.constant 0 : index
    %c0_18 = arith.constant 0 : index
    %10 = vector.load %arg7[%c0_15, %c0_16, %c0_17, %c0_18] : memref<1x1x16x16xf32, #tpu.memory_space<vmem>>, vector<1x1x16x16xf32>
    %11 = vector.shape_cast %10 : vector<1x1x16x16xf32> to vector<16x16xf32>
    %12 = vector.shape_cast %9 : vector<16x16xf32> to vector<1x1x16x16xf32>
    tpu.vector_store %arg7[%c0_15, %c0_16, %c0_17, %c0_18], %12 {strides = array<i32>} : memref<1x1x16x16xf32, #tpu.memory_space<vmem>>, vector<1x1x16x16xf32>,
    %cst_19 = arith.constant dense<0xFF800000> : vector<16xf32>
    %13 = vector.multi_reduction <maximumf>, %9, %cst_19 [0] : vector<16x16xf32> to vector<16xf32>
    %14 = vector.shape_cast %13 : vector<16xf32> to vector<1x16xf32>
    %15 = vector.broadcast %14 : vector<1x16xf32> to vector<16x16xf32>
    %16 = arith.subf %9, %15 : vector<16x16xf32>
    %17 = math.exp %16 : vector<16x16xf32>
    %cst_20 = arith.constant dense<0.000000e+00> : vector<16xf32>
    %18 = vector.multi_reduction <add>, %17, %cst_20 [0] : vector<16x16xf32> to vector<16xf32>
    %19 = vector.shape_cast %18 : vector<16xf32> to vector<1x16xf32>
    %20 = tpu.reciprocal %19 {approx = true} : vector<1x16xf32> -> vector<1x16xf32>
    %21 = vector.broadcast %20 : vector<1x16xf32> to vector<16x16xf32>
    %22 = arith.mulf %17, %21 : vector<16x16xf32>
    %23 = arith.truncf %22 : vector<16x16xf32> to vector<16x16xbf16>
    %cst_21 = arith.constant dense<0.000000e+00> : vector<16x8xf32>
    %24 = tpu.matmul %23, %5, %cst_21 {dimension_numbers = #tpu.dot_dimension_numbers<[1], [0], [0], [1], [0, 0, 1, 1], [], []>} : vector<16x16xbf16>, vector<16x8xbf16>, vector<16x8xf32> -> vector<16x8xf32>
    %25 = arith.truncf %24 : vector<16x8xf32> to vector<16x8xbf16>
    %c0_22 = arith.constant 0 : index
    %c0_23 = arith.constant 0 : index
    %c0_24 = arith.constant 0 : index
    %c0_25 = arith.constant 0 : index
    %26 = vector.load %arg6[%c0_22, %c0_23, %c0_24, %c0_25] : memref<1x1x16x8xbf16, #tpu.memory_space<vmem>>, vector<1x1x16x8xbf16>
    %27 = vector.shape_cast %26 : vector<1x1x16x8xbf16> to vector<16x8xbf16>
    %28 = vector.shape_cast %25 : vector<16x8xbf16> to vector<1x1x16x8xbf16>
    tpu.vector_store %arg6[%c0_22, %c0_23, %c0_24, %c0_25], %28 {strides = array<i32>} : memref<1x1x16x8xbf16, #tpu.memory_space<vmem>>, vector<1x1x16x8xbf16>,
    return
  }
  func.func @transform_0(%arg0: i32, %arg1: i32) -> (i32, i32, i32, i32) {
    %c0_i32 = arith.constant 0 : i32
    %c0_i32_0 = arith.constant 0 : i32
    %c0_i32_1 = arith.constant 0 : i32
    return %arg0, %arg1, %c0_i32, %c0_i32_0 : i32, i32, i32, i32
  }
  func.func @transform_1(%arg0: i32, %arg1: i32) -> (i32, i32, i32, i32) {
    %c0_i32 = arith.constant 0 : i32
    %c0_i32_0 = arith.constant 0 : i32
    %c0_i32_1 = arith.constant 0 : i32
    return %arg0, %arg1, %c0_i32, %c0_i32_0 : i32, i32, i32, i32
  }
  func.func @transform_2(%arg0: i32, %arg1: i32) -> (i32, i32, i32, i32) {
    %c0_i32 = arith.constant 0 : i32
    %c0_i32_0 = arith.constant 0 : i32
    %c0_i32_1 = arith.constant 0 : i32
    return %arg0, %arg1, %c0_i32, %c0_i32_0 : i32, i32, i32, i32
  }
  func.func @transform_3(%arg0: i32, %arg1: i32) -> (i32, i32, i32, i32) {
    %c0_i32 = arith.constant 0 : i32
    %c0_i32_0 = arith.constant 0 : i32
    %c0_i32_1 = arith.constant 0 : i32
    return %arg0, %arg1, %c0_i32, %c0_i32_0 : i32, i32, i32, i32
  }
  func.func @transform_4(%arg0: i32, %arg1: i32) -> (i32, i32, i32, i32) {
    %c0_i32 = arith.constant 0 : i32
    %c0_i32_0 = arith.constant 0 : i32
    %c0_i32_1 = arith.constant 0 : i32
    return %arg0, %arg1, %c0_i32, %c0_i32_0 : i32, i32, i32, i32
  }
  func.func @transform_5(%arg0: i32, %arg1: i32) -> (i32, i32, i32, i32) {
    %c0_i32 = arith.constant 0 : i32
    %c0_i32_0 = arith.constant 0 : i32
    %c0_i32_1 = arith.constant 0 : i32
    return %arg0, %arg1, %c0_i32, %c0_i32_0 : i32, i32, i32, i32
  }
}

</mosaic_0001>

<llo_original>
// kernel: fwd.5
$region0: #{fwd.5}
  #allocation0 [shape = 'u32[]', space=smem, size = 0x4, offset = 0x4, fixed_abs, tag = 'smem constant byte address 0x4 - core index']
  #allocation1 [shape = 'u32[144,128]{1,0:T(1,128)}', space=vmem, size = 0x12000, scoped, tag = 'internal scratch']
  %s0 = inlined_call_operand.vmem [shape: bf16[4,4,16,8], index: 0, kind: input, shape index: {}]
  %s1 = inlined_call_operand.vmem [shape: bf16[4,8,32], index: 1, kind: input, shape index: {}]
  %s2 = inlined_call_operand.vmem [shape: f32[4,16,32], index: 2, kind: input, shape index: {}]
  %s3 = inlined_call_operand.hbm [shape: f32[4,16,32], index: 3, kind: output, shape index: {}]
  %s4 = sld [smem:[#allocation0]]
  $region45: #{fwd.5} parent=0
    _
  %s6 = ssub.s32 1, %s4
  %s7 = scalar_select 0, %s6, %s4
  $region1: #{fwd.5} parent=0
    #allocation2 [shape = 'u8[16384]{0}', space=vmem, size = 0x4000, scoped, tag = 'output window, operand 0']
    #allocation3 [shape = 's32[2]{0}', space=sflag, size = 0x8, scoped, tag = 'scoped memory for fwd.5']
    %8 = vsyncpa [#allocation3], 0
    %s9 = scalar_lea.sflag [#allocation3], 1
    %10 = vsyncpa %s9, 0
    loop: start=0, step=1, limit=6
    $region2: #{fwd.5} parent=1 // loop_pre_header
      _
    $region3: #{fwd.5} parent=1 // loop_header
      %s12 = sphi 0, %s16
      %p13 = scmp.ge.s32.totalorder %s12, 6
      %s22 = sphi 0, %s24
      %s25 = sphi 0, %s22
      %s26 = sphi 0, %s25
      %s42 = sphi 0, %s26
      %s46 = sphi 0, %s46
      %s48 = sphi 0, %s46
      %s49 = sphi 0, %s48
      %s63 = sphi 0, %s49
      %s69 = sphi 0, %s71
      %s72 = sphi 0, %s69
      %s73 = sphi 0, %s72
      %s89 = sphi 0, %s73
      %s95 = sphi 0, %s97
      %s98 = sphi 0, %s95
      %s99 = sphi 0, %s98
      %s115 = sphi 0, %s99
    $region4: #{fwd.5} parent=1 // loop_header_branch
      %15 = sbr.rel (%p13) target = $region8
    $region5: #{fwd.5} parent=1 // loop_body
      %s17 = ssub.s32 %s12, 1
      %s18 = ssub.s32 %s12, 2
      %s19 = sadd.s32 %s12, 1
      %s20 = ssub.s32 %s12, %s19
      %p21 = scmp.eq.s32.totalorder %s20, 0
      %s23 = sadd.s32 %s22, 1
      %s24 = scalar_select %p21, %s22, %s23
      %p27 = pneg %p21
      %p28 = scmp.eq.s32.totalorder %s12, 3
      %p29 = por %p27, %p28
      %p30 = scmp.ne.s32.totalorder %s22, %s25
      %p31 = scmp.eq.s32.totalorder %s12, 0
      %p32 = por %p30, %p31
      %p33 = scmp.ne.s32.totalorder %s22, %s25
      %p34 = scmp.eq.s32.totalorder %s17, 3
      %p35 = por %p33, %p34
      %p36 = scmp.ne.s32.totalorder %s25, %s26
      %p37 = scmp.eq.s32.totalorder %s17, 0
      %p38 = por %p36, %p37
      %p39 = scmp.ne.s32.totalorder %s25, %s26
      %p40 = scmp.eq.s32.totalorder %s18, 3
      %p41 = por %p39, %p40
      %p43 = scmp.ne.s32.totalorder %s26, %s42
      %p44 = scmp.eq.s32.totalorder %s18, 0
      %p45 = por %p43, %p44
      %s47 = sadd.s32 %s46, 1
      %p50 = scmp.eq.s32.totalorder %s12, 3
      %p51 = scmp.ne.s32.totalorder %s46, %s48
      %p52 = scmp.eq.s32.totalorder %s12, 0
      %p53 = por %p51, %p52
      %p54 = scmp.ne.s32.totalorder %s46, %s48
      %p55 = scmp.eq.s32.totalorder %s17, 3
      %p56 = por %p54, %p55
      %p57 = scmp.ne.s32.totalorder %s48, %s49
      %p58 = scmp.eq.s32.totalorder %s17, 0
      %p59 = por %p57, %p58
      %p60 = scmp.ne.s32.totalorder %s48, %s49
      %p61 = scmp.eq.s32.totalorder %s18, 3
      %p62 = por %p60, %p61
      %p64 = scmp.ne.s32.totalorder %s49, %s63
      %p65 = scmp.eq.s32.totalorder %s18, 0
      %p66 = por %p64, %p65
      %s67 = ssub.s32 %s12, %s19
      %p68 = scmp.eq.s32.totalorder %s67, 0
      %s70 = sadd.s32 %s69, 1
      %s71 = scalar_select %p68, %s69, %s70
      %p74 = pneg %p68
      %p75 = scmp.eq.s32.totalorder %s12, 3
      %p76 = por %p74, %p75
      %p77 = scmp.ne.s32.totalorder %s69, %s72
      %p78 = scmp.eq.s32.totalorder %s12, 0
      %p79 = por %p77, %p78
      %p80 = scmp.ne.s32.totalorder %s69, %s72
      %p81 = scmp.eq.s32.totalorder %s17, 3
      %p82 = por %p80, %p81
      %p83 = scmp.ne.s32.totalorder %s72, %s73
      %p84 = scmp.eq.s32.totalorder %s17, 0
      %p85 = por %p83, %p84
      %p86 = scmp.ne.s32.totalorder %s72, %s73
      %p87 = scmp.eq.s32.totalorder %s18, 3
      %p88 = por %p86, %p87
      %p90 = scmp.ne.s32.totalorder %s73, %s89
      %p91 = scmp.eq.s32.totalorder %s18, 0
      %p92 = por %p90, %p91
      %s93 = ssub.s32 %s12, %s19
      %p94 = scmp.eq.s32.totalorder %s93, 0
      %s96 = sadd.s32 %s95, 1
      %s97 = scalar_select %p94, %s95, %s96
      %p100 = pneg %p94
      %p101 = scmp.eq.s32.totalorder %s12, 3
      %p102 = por %p100, %p101
      %p103 = scmp.ne.s32.totalorder %s95, %s98
      %p104 = scmp.eq.s32.totalorder %s12, 0
      %p105 = por %p103, %p104
      %p106 = scmp.ne.s32.totalorder %s95, %s98
      %p107 = scmp.eq.s32.totalorder %s17, 3
      %p108 = por %p106, %p107
      %p109 = scmp.ne.s32.totalorder %s98, %s99
      %p110 = scmp.eq.s32.totalorder %s17, 0
      %p111 = por %p109, %p110
      %p112 = scmp.ne.s32.totalorder %s98, %s99
      %p113 = scmp.eq.s32.totalorder %s18, 3
      %p114 = por %p112, %p113
      %p116 = scmp.ne.s32.totalorder %s99, %s115
      %p117 = scmp.eq.s32.totalorder %s18, 0
      %p118 = por %p116, %p117
      %p119 = scmp.le.s32.totalorder 1, %s12
      %p120 = scmp.lt.s32.totalorder %s12, 5
      %p121 = pnand %p119, %p120
      %p122 = pneg %p121
      // Predicated region
      $region9: #{fwd.5} parent=5 // pred_check
        _
      $region10: #{fwd.5} parent=5 // pred_check_branch
        %124 = sbr.rel (%p121) target = $region12
      $region11: #{fwd.5} parent=5 // pred_region
        %s125 = ssub.s32 %s12, 1
        // Predicated region
        $region13: #{fwd.5} parent=11 // pred_check
          %p126 = pneg %p59
        $region14: #{fwd.5} parent=11 // pred_check_branch
          %128 = sbr.rel (%p126) target = $region16
        $region15: #{fwd.5} parent=11 // pred_region
          _
        $region16: #{fwd.5} parent=11 // pred_fallthru
          _
      $region12: #{fwd.5} parent=5 // pred_fallthru
        _
      %p129 = scmp.lt.s32.totalorder %s12, 4
      // Predicated region
      $region17: #{fwd.5} parent=5 // pred_check
        %p130 = pneg %p129
      $region18: #{fwd.5} parent=5 // pred_check_branch
        %132 = sbr.rel (%p130) target = $region20
      $region19: #{fwd.5} parent=5 // pred_region
        // Predicated region
        $region21: #{fwd.5} parent=19 // pred_check
          %p133 = pneg %p32
        $region22: #{fwd.5} parent=19 // pred_check_branch
          %135 = sbr.rel (%p133) target = $region24
        $region23: #{fwd.5} parent=19 // pred_region
          %p136 = scmp.lt.s32.totalorder %s12, 3
          %s137 = scalar_select %p136, %s12, 3
          %s138 = smul.addr %s137, 8
          %s139 = smul.addr %s138, 4
          %s140 = scalar_lea.vmem %s0, %s139
        $region24: #{fwd.5} parent=19 // pred_fallthru
          _
        // Predicated region
        $region25: #{fwd.5} parent=19 // pred_check
          %p141 = pneg %p79
        $region26: #{fwd.5} parent=19 // pred_check_branch
          %143 = sbr.rel (%p141) target = $region28
        $region27: #{fwd.5} parent=19 // pred_region
          %p144 = scmp.lt.s32.totalorder %s12, 3
          %s145 = scalar_select %p144, %s12, 3
          %s146 = smul.addr %s145, 2
          %s147 = smul.addr %s146, 8
          %s148 = scalar_lea.vmem %s2, %s147
        $region28: #{fwd.5} parent=19 // pred_fallthru
          _
      $region20: #{fwd.5} parent=5 // pred_fallthru
        _
      %p149 = scmp.le.s32.totalorder 1, %s12
      %p150 = scmp.lt.s32.totalorder %s12, 5
      %p151 = pnand %p149, %p150
      %p152 = pneg %p151
      // Predicated region
      $region29: #{fwd.5} parent=5 // pred_check
        _
      $region30: #{fwd.5} parent=5 // pred_check_branch
        %154 = sbr.rel (%p151) target = $region32
      $region31: #{fwd.5} parent=5 // pred_region
        %s155 = ssub.s32 %s12, 1
        %p156 = scmp.lt.s32.totalorder %s17, 3
        %s157 = scalar_select %p156, %s17, 3
        %s158 = smul.addr %s157, 8
        %s159 = smul.addr %s158, 4
        %s160 = scalar_lea.vmem %s0, %s159
        %p161 = pneg %p38
        %p162 = pneg %p35
        %p163 = pneg %p59
        %p164 = pneg %p56
        %p165 = scmp.lt.s32.totalorder %s17, 3
        %s166 = scalar_select %p165, %s17, 3
        %s167 = smul.addr %s166, 2
        %s168 = smul.addr %s167, 8
        %s169 = scalar_lea.vmem %s2, %s168
        %p170 = pneg %p85
        %p171 = pneg %p82
        %p172 = pneg %p111
        %p173 = pneg %p108
        %s174 = sand.u32 %s98, 1
        %s175 = scalar_lea.sflag [#allocation3], %s174
        %s176 = sand.u32 %s98, 1
        %s177 = smul.addr %s176, 16
        %s178 = scalar_lea.vmem [#allocation2], %s177
        %p179 = scmp.lt.s32.totalorder %s17, 3
        %s180 = scalar_select %p179, %s17, 3
        %s181 = smul.addr %s180, 8
        %s182 = smul.addr %s181, 4
        %s183 = scalar_lea.vmem %s0, %s182
        %p184 = scmp.lt.s32.totalorder %s17, 3
        %s185 = scalar_select %p184, %s17, 3
        %s186 = smul.addr %s185, 2
        %s187 = smul.addr %s186, 8
        %s188 = scalar_lea.vmem %s2, %s187
        %v190 = vld [vmem:[%s188] sm:$0xff]
        %v191 = vld [vmem:[%s188 + $0x8] sm:$0xff]
        %v192 = vld [vmem:[%s183] sm:$0xf]
        %v193 = vld [vmem:[%s183 + $0x4] sm:$0xf]
        %v194 = vld [vmem:[%s1] sm:$0xf]
        %v197 = vunpack.c.l.b16 %v192
        %v198 = vunpack.c.l.b16 %v193
        %v199 = vpack.c.b16 %v198, %v197
        %vm200 = vcmask 64512
        %v202 = vsel %vm200, %v199, 0
        %vm204 = vcmask 1043456
        %v206 = vsel %vm204, %v194, 0
        %208 = vmatprep.subr.bf16.mxu0 0
        %209 = vmatpush1.bf16.msra.mxu0 %v206
        %210 = vmatprep.subr.bf16.mxu0 0
        %211 = vmatpush1.bf16.msra.mxu0 0
        %212 = vmatprep.subr.bf16.mxu0 0
        %213 = vmatpush1.bf16.msra.mxu0 0
        %214 = vmatprep.subr.bf16.mxu0 0
        %215 = vmatpush1.bf16.msra.mxu0 0
        %216 = vmatprep.subr.bf16.mxu0 0
        %217 = vmatpush1.bf16.msra.mxu0 0
        %218 = vmatprep.subr.bf16.mxu0 0
        %219 = vmatpush1.bf16.msra.mxu0 0
        %220 = vmatprep.subr.bf16.mxu0 0
        %221 = vmatpush1.bf16.msra.mxu0 0
        %222 = vmatprep.subr.bf16.mxu0 0
        %223 = vmatpush1.bf16.msra.mxu0 0
        %224 = vmatprep.subr.bf16.mxu0 0
        %225 = vmatpush1.bf16.msra.mxu0 0
        %226 = vmatprep.subr.bf16.mxu0 0
        %227 = vmatpush1.bf16.msra.mxu0 0
        %228 = vmatprep.subr.bf16.mxu0 0
        %229 = vmatpush1.bf16.msra.mxu0 0
        %230 = vmatprep.subr.bf16.mxu0 0
        %231 = vmatpush1.bf16.msra.mxu0 0
        %232 = vmatprep.subr.bf16.mxu0 0
        %233 = vmatpush1.bf16.msra.mxu0 0
        %234 = vmatprep.subr.bf16.mxu0 0
        %235 = vmatpush1.bf16.msra.mxu0 0
        %236 = vmatprep.subr.bf16.mxu0 0
        %237 = vmatpush1.bf16.msra.mxu0 0
        %238 = vmatprep.subr.bf16.mxu0 0
        %239 = vmatpush1.bf16.msra.mxu0 0
        %240 = vmatprep.mubr.bf16.mxu0 0
        %241 = vmatmul.mubr.bf16.gmra.mrb[0].mxu0 %v202
        %v242 = vpop.f32.mrb[0].mxu0
        %v243 = vadd.f32 0.0, %v242
        %v244 = vpop.f32.mrb[0].mxu0
        %v245 = vpop.f32.mrb[0].mxu0
        %v246 = vadd.f32 0.0, %v245
        %v247 = vpop.f32.mrb[0].mxu0
        %248 = vdwg.mxu0
        %v249 = vadd.f32 %v190, %v243
        %v250 = vadd.f32 %v191, %v246
        %s251 = scalar_lea.vmem %s183, 8
        %v252 = vld [vmem:[%s251] sm:$0xf]
        %v253 = vld [vmem:[%s251 + $0x4] sm:$0xf]
        %s254 = scalar_lea.vmem %s1, 4
        %v255 = vld [vmem:[%s254] sm:$0xf]
        %v258 = vunpack.c.l.b16 %v252
        %v259 = vunpack.c.l.b16 %v253
        %v260 = vpack.c.b16 %v259, %v258
        %v262 = vsel %vm200, %v260, 0
        %v265 = vsel %vm204, %v255, 0
        %267 = vmatprep.subr.bf16.mxu0 0
        %268 = vmatpush1.bf16.msra.mxu0 %v265
        %269 = vmatprep.subr.bf16.mxu0 0
        %270 = vmatpush1.bf16.msra.mxu0 0
        %271 = vmatprep.subr.bf16.mxu0 0
        %272 = vmatpush1.bf16.msra.mxu0 0
        %273 = vmatprep.subr.bf16.mxu0 0
        %274 = vmatpush1.bf16.msra.mxu0 0
        %275 = vmatprep.subr.bf16.mxu0 0
        %276 = vmatpush1.bf16.msra.mxu0 0
        %277 = vmatprep.subr.bf16.mxu0 0
        %278 = vmatpush1.bf16.msra.mxu0 0
        %279 = vmatprep.subr.bf16.mxu0 0
        %280 = vmatpush1.bf16.msra.mxu0 0
        %281 = vmatprep.subr.bf16.mxu0 0
        %282 = vmatpush1.bf16.msra.mxu0 0
        %283 = vmatprep.subr.bf16.mxu0 0
        %284 = vmatpush1.bf16.msra.mxu0 0
        %285 = vmatprep.subr.bf16.mxu0 0
        %286 = vmatpush1.bf16.msra.mxu0 0
        %287 = vmatprep.subr.bf16.mxu0 0
        %288 = vmatpush1.bf16.msra.mxu0 0
        %289 = vmatprep.subr.bf16.mxu0 0
        %290 = vmatpush1.bf16.msra.mxu0 0
        %291 = vmatprep.subr.bf16.mxu0 0
        %292 = vmatpush1.bf16.msra.mxu0 0
        %293 = vmatprep.subr.bf16.mxu0 0
        %294 = vmatpush1.bf16.msra.mxu0 0
        %295 = vmatprep.subr.bf16.mxu0 0
        %296 = vmatpush1.bf16.msra.mxu0 0
        %297 = vmatprep.subr.bf16.mxu0 0
        %298 = vmatpush1.bf16.msra.mxu0 0
        %299 = vmatprep.mubr.bf16.mxu0 0
        %300 = vmatmul.mubr.bf16.gmra.mrb[0].mxu0 %v262
        %v301 = vpop.f32.mrb[0].mxu0
        %v302 = vadd.f32 0.0, %v301
        %v303 = vpop.f32.mrb[0].mxu0
        %v304 = vpop.f32.mrb[0].mxu0
        %v305 = vadd.f32 0.0, %v304
        %v306 = vpop.f32.mrb[0].mxu0
        %307 = vdwg.mxu0
        %v308 = vadd.f32 %v249, %v302
        %v309 = vadd.f32 %v250, %v305
        %s310 = scalar_lea.vmem %s183, 16
        %v311 = vld [vmem:[%s310] sm:$0xf]
        %v312 = vld [vmem:[%s310 + $0x4] sm:$0xf]
        %s313 = scalar_lea.vmem %s1, 8
        %v314 = vld [vmem:[%s313] sm:$0xf]
        %v317 = vunpack.c.l.b16 %v311
        %v318 = vunpack.c.l.b16 %v312
        %v319 = vpack.c.b16 %v318, %v317
        %v321 = vsel %vm200, %v319, 0
        %v324 = vsel %vm204, %v314, 0
        %326 = vmatprep.subr.bf16.mxu0 0
        %327 = vmatpush1.bf16.msra.mxu0 %v324
        %328 = vmatprep.subr.bf16.mxu0 0
        %329 = vmatpush1.bf16.msra.mxu0 0
        %330 = vmatprep.subr.bf16.mxu0 0
        %331 = vmatpush1.bf16.msra.mxu0 0
        %332 = vmatprep.subr.bf16.mxu0 0
        %333 = vmatpush1.bf16.msra.mxu0 0
        %334 = vmatprep.subr.bf16.mxu0 0
        %335 = vmatpush1.bf16.msra.mxu0 0
        %336 = vmatprep.subr.bf16.mxu0 0
        %337 = vmatpush1.bf16.msra.mxu0 0
        %338 = vmatprep.subr.bf16.mxu0 0
        %339 = vmatpush1.bf16.msra.mxu0 0
        %340 = vmatprep.subr.bf16.mxu0 0
        %341 = vmatpush1.bf16.msra.mxu0 0
        %342 = vmatprep.subr.bf16.mxu0 0
        %343 = vmatpush1.bf16.msra.mxu0 0
        %344 = vmatprep.subr.bf16.mxu0 0
        %345 = vmatpush1.bf16.msra.mxu0 0
        %346 = vmatprep.subr.bf16.mxu0 0
        %347 = vmatpush1.bf16.msra.mxu0 0
        %348 = vmatprep.subr.bf16.mxu0 0
        %349 = vmatpush1.bf16.msra.mxu0 0
        %350 = vmatprep.subr.bf16.mxu0 0
        %351 = vmatpush1.bf16.msra.mxu0 0
        %352 = vmatprep.subr.bf16.mxu0 0
        %353 = vmatpush1.bf16.msra.mxu0 0
        %354 = vmatprep.subr.bf16.mxu0 0
        %355 = vmatpush1.bf16.msra.mxu0 0
        %356 = vmatprep.subr.bf16.mxu0 0
        %357 = vmatpush1.bf16.msra.mxu0 0
        %358 = vmatprep.mubr.bf16.mxu0 0
        %359 = vmatmul.mubr.bf16.gmra.mrb[0].mxu0 %v321
        %v360 = vpop.f32.mrb[0].mxu0
        %v361 = vadd.f32 0.0, %v360
        %v362 = vpop.f32.mrb[0].mxu0
        %v363 = vpop.f32.mrb[0].mxu0
        %v364 = vadd.f32 0.0, %v363
        %v365 = vpop.f32.mrb[0].mxu0
        %366 = vdwg.mxu0
        %v367 = vadd.f32 %v308, %v361
        %v368 = vadd.f32 %v309, %v364
        %s369 = scalar_lea.vmem %s183, 24
        %v370 = vld [vmem:[%s369] sm:$0xf]
        %v371 = vld [vmem:[%s369 + $0x4] sm:$0xf]
        %s372 = scalar_lea.vmem %s1, 12
        %v373 = vld [vmem:[%s372] sm:$0xf]
        %v376 = vunpack.c.l.b16 %v370
        %v377 = vunpack.c.l.b16 %v371
        %v378 = vpack.c.b16 %v377, %v376
        %v380 = vsel %vm200, %v378, 0
        %v383 = vsel %vm204, %v373, 0
        %385 = vmatprep.subr.bf16.mxu0 0
        %386 = vmatpush1.bf16.msra.mxu0 %v383
        %387 = vmatprep.subr.bf16.mxu0 0
        %388 = vmatpush1.bf16.msra.mxu0 0
        %389 = vmatprep.subr.bf16.mxu0 0
        %390 = vmatpush1.bf16.msra.mxu0 0
        %391 = vmatprep.subr.bf16.mxu0 0
        %392 = vmatpush1.bf16.msra.mxu0 0
        %393 = vmatprep.subr.bf16.mxu0 0
        %394 = vmatpush1.bf16.msra.mxu0 0
        %395 = vmatprep.subr.bf16.mxu0 0
        %396 = vmatpush1.bf16.msra.mxu0 0
        %397 = vmatprep.subr.bf16.mxu0 0
        %398 = vmatpush1.bf16.msra.mxu0 0
        %399 = vmatprep.subr.bf16.mxu0 0
        %400 = vmatpush1.bf16.msra.mxu0 0
        %401 = vmatprep.subr.bf16.mxu0 0
        %402 = vmatpush1.bf16.msra.mxu0 0
        %403 = vmatprep.subr.bf16.mxu0 0
        %404 = vmatpush1.bf16.msra.mxu0 0
        %405 = vmatprep.subr.bf16.mxu0 0
        %406 = vmatpush1.bf16.msra.mxu0 0
        %407 = vmatprep.subr.bf16.mxu0 0
        %408 = vmatpush1.bf16.msra.mxu0 0
        %409 = vmatprep.subr.bf16.mxu0 0
        %410 = vmatpush1.bf16.msra.mxu0 0
        %411 = vmatprep.subr.bf16.mxu0 0
        %412 = vmatpush1.bf16.msra.mxu0 0
        %413 = vmatprep.subr.bf16.mxu0 0
        %414 = vmatpush1.bf16.msra.mxu0 0
        %415 = vmatprep.subr.bf16.mxu0 0
        %416 = vmatpush1.bf16.msra.mxu0 0
        %417 = vmatprep.mubr.bf16.mxu0 0
        %418 = vmatmul.mubr.bf16.gmra.mrb[0].mxu0 %v380
        %v419 = vpop.f32.mrb[0].mxu0
        %v420 = vadd.f32 0.0, %v419
        %v421 = vpop.f32.mrb[0].mxu0
        %v422 = vpop.f32.mrb[0].mxu0
        %v423 = vadd.f32 0.0, %v422
        %v424 = vpop.f32.mrb[0].mxu0
        %425 = vdwg.mxu0
        %v426 = vadd.f32 %v367, %v420
        %v427 = vadd.f32 %v368, %v423
        %vm428 = vcmask 261120
        %v429 = vsel %vm428, %v426, 0.0
        %430 = vadd.xlane.f32.xlu0 %v429
        %v431 = vpop.xlane.xlu0 %430
        %v432 = vsel %vm428, %v427, 0.0
        %433 = vadd.xlane.f32.xlu0 %v432
        %v434 = vpop.xlane.xlu0 %433
        %v435 = vrcp.pop 32.0
        %v436 = vmul.f32 %v431, %v435
        %v437 = vmul.f32 %v434, %v435
        %v438 = vsub.f32 %v426, %v436
        %v439 = vsub.f32 %v427, %v437
        %v440 = vmul.f32 %v438, %v438
        %v441 = vmul.f32 %v439, %v439
        %v442 = vsel %vm428, %v440, 0.0
        %443 = vadd.xlane.f32.xlu0 %v442
        %v444 = vpop.xlane.xlu0 %443
        %v445 = vsel %vm428, %v441, 0.0
        %446 = vadd.xlane.f32.xlu0 %v445
        %v447 = vpop.xlane.xlu0 %446
        %v448 = vmul.f32 %v444, %v435
        %v449 = vmul.f32 %v447, %v435
        %v450 = vadd.f32 %v448, 1e-05
        %v451 = vadd.f32 %v449, 1e-05
        %v452 = vrsqrt.pop %v450
        %v453 = vrsqrt.pop %v451
        %v454 = vmul.f32 %v438, %v452
        %v455 = vmul.f32 %v439, %v453
        %456 = vst.msk [vmem:[%s178] sm:$0xff] %vm428, %v454
        %457 = vst.msk [vmem:[%s178 + $0x8] sm:$0xff] %vm428, %v455
        %s458 = sand.u32 %s98, 1
        %s459 = scalar_lea.sflag [#allocation3], %s458
        %s460 = sand.u32 %s98, 1
        %s461 = smul.addr %s460, 16
        %s462 = scalar_lea.vmem [#allocation2], %s461
        // Predicated region
        $region33: #{fwd.5} parent=31 // pred_check
          %p463 = pneg %p108
        $region34: #{fwd.5} parent=31 // pred_check_branch
          %465 = sbr.rel (%p463) target = $region36
        $region35: #{fwd.5} parent=31 // pred_region
          %s467 = ssub.s32 256, 256
          %468 = vsyncadd %s459, %s467
          %s469 = smul.addr %s17, 2
          %s470 = smul.addr %s469, 128
          %s471 = scalar_lea.hbm %s3, %s470
          %s472 = sshll.u32 %s462, 4
          %s473 = int_to_ptr.vmem [resolvable:$true] %s472
          %478 = dma.vmem_to_hbm [thread:$0]  %s473, 256, %s471, %s459, 128, 128, 8
        $region36: #{fwd.5} parent=31 // pred_fallthru
          _
      $region32: #{fwd.5} parent=5 // pred_fallthru
        _
      %p479 = scmp.le.s32.totalorder 2, %s12
      // Predicated region
      $region37: #{fwd.5} parent=5 // pred_check
        %p480 = pneg %p479
      $region38: #{fwd.5} parent=5 // pred_check_branch
        %482 = sbr.rel (%p480) target = $region40
      $region39: #{fwd.5} parent=5 // pred_region
        %s483 = ssub.s32 %s12, 2
        // Predicated region
        $region41: #{fwd.5} parent=39 // pred_check
          %p484 = pneg %p114
        $region42: #{fwd.5} parent=39 // pred_check_branch
          %486 = sbr.rel (%p484) target = $region44
        $region43: #{fwd.5} parent=39 // pred_region
          %s487 = sand.u32 %s99, 1
          %s488 = scalar_lea.sflag [#allocation3], %s487
          %s489 = sand.u32 %s99, 1
          %s490 = smul.addr %s489, 16
          %s491 = scalar_lea.vmem [#allocation2], %s490
          %492 = dma.done %s488, 256
        $region44: #{fwd.5} parent=39 // pred_fallthru
          _
      $region40: #{fwd.5} parent=5 // pred_fallthru
        _
    $region6: #{fwd.5} parent=1 // loop_footer
      %s16 = sadd.s32 1, %s12
    $region7: #{fwd.5} parent=1 // loop_footer_branch
      %11 = sbr.rel target = $region3
    $region8: #{fwd.5} parent=1 // loop_exit
      _
    %493 = vsyncpa [#allocation3], 1
    %s494 = scalar_lea.sflag [#allocation3], 1
    %495 = vsyncpa %s494, 1

// kernel: fwd.4
$region0: #{fwd.4}
  #allocation0 [shape = 'u32[]', space=smem, size = 0x4, offset = 0x4, fixed_abs, tag = 'smem constant byte address 0x4 - core index']
  #allocation1 [shape = 'u32[144,128]{1,0:T(1,128)}', space=vmem, size = 0x12000, scoped, tag = 'internal scratch']
  %s0 = inlined_call_operand.vmem [shape: bf16[4,4,16,8], index: 0, kind: input, shape index: {}]
  %s1 = inlined_call_operand.vmem [shape: bf16[4,4,16,8], index: 1, kind: input, shape index: {}]
  %s2 = inlined_call_operand.vmem [shape: bf16[4,4,16,8], index: 2, kind: input, shape index: {}]
  %s3 = inlined_call_operand.vmem [shape: f32[4,4,16,16], index: 3, kind: input, shape index: {}, may-alias: {3,5}]
  %s4 = inlined_call_operand.vmem [shape: bf16[4,4,16,8], index: 4, kind: output, shape index: {0}]
  %s5 = inlined_call_operand.vmem [shape: f32[4,4,16,16], index: 5, kind: output, shape index: {1}, may-alias: {3,5}]
  %6 = xla_tuple %s4, %s5
  %s7 = sld [smem:[#allocation0]]
  $region57: #{fwd.4} parent=0
    _
  %s9 = ssub.s32 1, %s7
  %s10 = scalar_select 0, %s9, %s7
  loop: start=0, step=1, limit=18
  $region2: #{fwd.4} parent=0 // loop_pre_header
    _
  $region3: #{fwd.4} parent=0 // loop_header
    %s12 = sphi 0, %s16
    %p13 = scmp.ge.s32.totalorder %s12, 18
    %s19 = sphi 0, %s31
    %s20 = sphi 0, %s27
    %s21 = sphi 0, %s19
    %s22 = sphi 0, %s20
    %s23 = sphi 0, %s21
    %s24 = sphi 0, %s22
    %s36 = sphi 0, %s38
    %s39 = sphi 0, %s36
    %s40 = sphi 0, %s39
    %s56 = sphi 0, %s40
    %s64 = sphi 0, %s66
    %s67 = sphi 0, %s64
    %s68 = sphi 0, %s67
    %s84 = sphi 0, %s68
    %s92 = sphi 0, %s94
    %s95 = sphi 0, %s92
    %s96 = sphi 0, %s95
    %s112 = sphi 0, %s96
    %s120 = sphi 0, %s122
    %s123 = sphi 0, %s120
    %s124 = sphi 0, %s123
    %s140 = sphi 0, %s124
    %s148 = sphi 0, %s150
    %s151 = sphi 0, %s148
    %s152 = sphi 0, %s151
    %s168 = sphi 0, %s152
    %s176 = sphi 0, %s178
    %s179 = sphi 0, %s176
    %s180 = sphi 0, %s179
    %s196 = sphi 0, %s180
  $region4: #{fwd.4} parent=0 // loop_header_branch
    %15 = sbr.rel (%p13) target = $region8
  $region5: #{fwd.4} parent=0 // loop_body
    %s17 = ssub.s32 %s12, 1
    %s18 = ssub.s32 %s12, 2
    %s25 = sadd.s32 1, %s20
    %p26 = scmp.ge.s32.totalorder %s25, 4
    %s27 = scalar_select %p26, 0, %s25
    %s28 = sadd.s32 1, %s19
    %s29 = scalar_select %p26, %s28, %s19
    %p30 = scmp.ge.s32.totalorder %s29, 4
    %s31 = scalar_select %p30, 0, %s29
    %s32 = ssub.s32 %s19, %s31
    %s33 = ssub.s32 %s20, %s27
    %s34 = sor.u32 %s32, %s33
    %p35 = scmp.eq.s32.totalorder %s34, 0
    %s37 = sadd.s32 %s36, 1
    %s38 = scalar_select %p35, %s36, %s37
    %p41 = pneg %p35
    %p42 = scmp.eq.s32.totalorder %s12, 15
    %p43 = por %p41, %p42
    %p44 = scmp.ne.s32.totalorder %s36, %s39
    %p45 = scmp.eq.s32.totalorder %s12, 0
    %p46 = por %p44, %p45
    %p47 = scmp.ne.s32.totalorder %s36, %s39
    %p48 = scmp.eq.s32.totalorder %s17, 15
    %p49 = por %p47, %p48
    %p50 = scmp.ne.s32.totalorder %s39, %s40
    %p51 = scmp.eq.s32.totalorder %s17, 0
    %p52 = por %p50, %p51
    %p53 = scmp.ne.s32.totalorder %s39, %s40
    %p54 = scmp.eq.s32.totalorder %s18, 15
    %p55 = por %p53, %p54
    %p57 = scmp.ne.s32.totalorder %s40, %s56
    %p58 = scmp.eq.s32.totalorder %s18, 0
    %p59 = por %p57, %p58
    %s60 = ssub.s32 %s19, %s31
    %s61 = ssub.s32 %s20, %s27
    %s62 = sor.u32 %s60, %s61
    %p63 = scmp.eq.s32.totalorder %s62, 0
    %s65 = sadd.s32 %s64, 1
    %s66 = scalar_select %p63, %s64, %s65
    %p69 = pneg %p63
    %p70 = scmp.eq.s32.totalorder %s12, 15
    %p71 = por %p69, %p70
    %p72 = scmp.ne.s32.totalorder %s64, %s67
    %p73 = scmp.eq.s32.totalorder %s12, 0
    %p74 = por %p72, %p73
    %p75 = scmp.ne.s32.totalorder %s64, %s67
    %p76 = scmp.eq.s32.totalorder %s17, 15
    %p77 = por %p75, %p76
    %p78 = scmp.ne.s32.totalorder %s67, %s68
    %p79 = scmp.eq.s32.totalorder %s17, 0
    %p80 = por %p78, %p79
    %p81 = scmp.ne.s32.totalorder %s67, %s68
    %p82 = scmp.eq.s32.totalorder %s18, 15
    %p83 = por %p81, %p82
    %p85 = scmp.ne.s32.totalorder %s68, %s84
    %p86 = scmp.eq.s32.totalorder %s18, 0
    %p87 = por %p85, %p86
    %s88 = ssub.s32 %s19, %s31
    %s89 = ssub.s32 %s20, %s27
    %s90 = sor.u32 %s88, %s89
    %p91 = scmp.eq.s32.totalorder %s90, 0
    %s93 = sadd.s32 %s92, 1
    %s94 = scalar_select %p91, %s92, %s93
    %p97 = pneg %p91
    %p98 = scmp.eq.s32.totalorder %s12, 15
    %p99 = por %p97, %p98
    %p100 = scmp.ne.s32.totalorder %s92, %s95
    %p101 = scmp.eq.s32.totalorder %s12, 0
    %p102 = por %p100, %p101
    %p103 = scmp.ne.s32.totalorder %s92, %s95
    %p104 = scmp.eq.s32.totalorder %s17, 15
    %p105 = por %p103, %p104
    %p106 = scmp.ne.s32.totalorder %s95, %s96
    %p107 = scmp.eq.s32.totalorder %s17, 0
    %p108 = por %p106, %p107
    %p109 = scmp.ne.s32.totalorder %s95, %s96
    %p110 = scmp.eq.s32.totalorder %s18, 15
    %p111 = por %p109, %p110
    %p113 = scmp.ne.s32.totalorder %s96, %s112
    %p114 = scmp.eq.s32.totalorder %s18, 0
    %p115 = por %p113, %p114
    %s116 = ssub.s32 %s19, %s31
    %s117 = ssub.s32 %s20, %s27
    %s118 = sor.u32 %s116, %s117
    %p119 = scmp.eq.s32.totalorder %s118, 0
    %s121 = sadd.s32 %s120, 1
    %s122 = scalar_select %p119, %s120, %s121
    %p125 = pneg %p119
    %p126 = scmp.eq.s32.totalorder %s12, 15
    %p127 = por %p125, %p126
    %p128 = scmp.ne.s32.totalorder %s120, %s123
    %p129 = scmp.eq.s32.totalorder %s12, 0
    %p130 = por %p128, %p129
    %p131 = scmp.ne.s32.totalorder %s120, %s123
    %p132 = scmp.eq.s32.totalorder %s17, 15
    %p133 = por %p131, %p132
    %p134 = scmp.ne.s32.totalorder %s123, %s124
    %p135 = scmp.eq.s32.totalorder %s17, 0
    %p136 = por %p134, %p135
    %p137 = scmp.ne.s32.totalorder %s123, %s124
    %p138 = scmp.eq.s32.totalorder %s18, 15
    %p139 = por %p137, %p138
    %p141 = scmp.ne.s32.totalorder %s124, %s140
    %p142 = scmp.eq.s32.totalorder %s18, 0
    %p143 = por %p141, %p142
    %s144 = ssub.s32 %s19, %s31
    %s145 = ssub.s32 %s20, %s27
    %s146 = sor.u32 %s144, %s145
    %p147 = scmp.eq.s32.totalorder %s146, 0
    %s149 = sadd.s32 %s148, 1
    %s150 = scalar_select %p147, %s148, %s149
    %p153 = pneg %p147
    %p154 = scmp.eq.s32.totalorder %s12, 15
    %p155 = por %p153, %p154
    %p156 = scmp.ne.s32.totalorder %s148, %s151
    %p157 = scmp.eq.s32.totalorder %s12, 0
    %p158 = por %p156, %p157
    %p159 = scmp.ne.s32.totalorder %s148, %s151
    %p160 = scmp.eq.s32.totalorder %s17, 15
    %p161 = por %p159, %p160
    %p162 = scmp.ne.s32.totalorder %s151, %s152
    %p163 = scmp.eq.s32.totalorder %s17, 0
    %p164 = por %p162, %p163
    %p165 = scmp.ne.s32.totalorder %s151, %s152
    %p166 = scmp.eq.s32.totalorder %s18, 15
    %p167 = por %p165, %p166
    %p169 = scmp.ne.s32.totalorder %s152, %s168
    %p170 = scmp.eq.s32.totalorder %s18, 0
    %p171 = por %p169, %p170
    %s172 = ssub.s32 %s19, %s31
    %s173 = ssub.s32 %s20, %s27
    %s174 = sor.u32 %s172, %s173
    %p175 = scmp.eq.s32.totalorder %s174, 0
    %s177 = sadd.s32 %s176, 1
    %s178 = scalar_select %p175, %s176, %s177
    %p181 = pneg %p175
    %p182 = scmp.eq.s32.totalorder %s12, 15
    %p183 = por %p181, %p182
    %p184 = scmp.ne.s32.totalorder %s176, %s179
    %p185 = scmp.eq.s32.totalorder %s12, 0
    %p186 = por %p184, %p185
    %p187 = scmp.ne.s32.totalorder %s176, %s179
    %p188 = scmp.eq.s32.totalorder %s17, 15
    %p189 = por %p187, %p188
    %p190 = scmp.ne.s32.totalorder %s179, %s180
    %p191 = scmp.eq.s32.totalorder %s17, 0
    %p192 = por %p190, %p191
    %p193 = scmp.ne.s32.totalorder %s179, %s180
    %p194 = scmp.eq.s32.totalorder %s18, 15
    %p195 = por %p193, %p194
    %p197 = scmp.ne.s32.totalorder %s180, %s196
    %p198 = scmp.eq.s32.totalorder %s18, 0
    %p199 = por %p197, %p198
    %p200 = scmp.le.s32.totalorder 1, %s12
    %p201 = scmp.lt.s32.totalorder %s12, 17
    %p202 = pnand %p200, %p201
    %p203 = pneg %p202
    // Predicated region
    $region9: #{fwd.4} parent=5 // pred_check
      _
    $region10: #{fwd.4} parent=5 // pred_check_branch
      %205 = sbr.rel (%p202) target = $region12
    $region11: #{fwd.4} parent=5 // pred_region
      %s206 = ssub.s32 %s12, 1
    $region12: #{fwd.4} parent=5 // pred_fallthru
      _
    %p207 = scmp.lt.s32.totalorder %s12, 16
    // Predicated region
    $region13: #{fwd.4} parent=5 // pred_check
      %p208 = pneg %p207
    $region14: #{fwd.4} parent=5 // pred_check_branch
      %210 = sbr.rel (%p208) target = $region16
    $region15: #{fwd.4} parent=5 // pred_region
      // Predicated region
      $region17: #{fwd.4} parent=15 // pred_check
        %p211 = pneg %p46
      $region18: #{fwd.4} parent=15 // pred_check_branch
        %213 = sbr.rel (%p211) target = $region20
      $region19: #{fwd.4} parent=15 // pred_region
        %p214 = scmp.lt.s32.totalorder %s19, 3
        %s215 = scalar_select %p214, %s19, 3
        %p216 = scmp.lt.s32.totalorder %s20, 3
        %s217 = scalar_select %p216, %s20, 3
        %s218 = smul.addr %s217, 2
        %s219 = smul.addr %s215, 8
        %s220 = sadd.s32 %s218, %s219
        %s221 = smul.addr %s220, 4
        %s222 = scalar_lea.vmem %s0, %s221
      $region20: #{fwd.4} parent=15 // pred_fallthru
        _
      // Predicated region
      $region21: #{fwd.4} parent=15 // pred_check
        %p223 = pneg %p74
      $region22: #{fwd.4} parent=15 // pred_check_branch
        %225 = sbr.rel (%p223) target = $region24
      $region23: #{fwd.4} parent=15 // pred_region
        %p226 = scmp.lt.s32.totalorder %s19, 3
        %s227 = scalar_select %p226, %s19, 3
        %p228 = scmp.lt.s32.totalorder %s20, 3
        %s229 = scalar_select %p228, %s20, 3
        %s230 = smul.addr %s229, 2
        %s231 = smul.addr %s227, 8
        %s232 = sadd.s32 %s230, %s231
        %s233 = smul.addr %s232, 4
        %s234 = scalar_lea.vmem %s1, %s233
      $region24: #{fwd.4} parent=15 // pred_fallthru
        _
      // Predicated region
      $region25: #{fwd.4} parent=15 // pred_check
        %p235 = pneg %p102
      $region26: #{fwd.4} parent=15 // pred_check_branch
        %237 = sbr.rel (%p235) target = $region28
      $region27: #{fwd.4} parent=15 // pred_region
        %p238 = scmp.lt.s32.totalorder %s19, 3
        %s239 = scalar_select %p238, %s19, 3
        %p240 = scmp.lt.s32.totalorder %s20, 3
        %s241 = scalar_select %p240, %s20, 3
        %s242 = smul.addr %s241, 2
        %s243 = smul.addr %s239, 8
        %s244 = sadd.s32 %s242, %s243
        %s245 = smul.addr %s244, 4
        %s246 = scalar_lea.vmem %s2, %s245
      $region28: #{fwd.4} parent=15 // pred_fallthru
        _
      // Predicated region
      $region29: #{fwd.4} parent=15 // pred_check
        %p247 = pneg %p130
      $region30: #{fwd.4} parent=15 // pred_check_branch
        %249 = sbr.rel (%p247) target = $region32
      $region31: #{fwd.4} parent=15 // pred_region
        %p250 = scmp.lt.s32.totalorder %s19, 3
        %s251 = scalar_select %p250, %s19, 3
        %p252 = scmp.lt.s32.totalorder %s20, 3
        %s253 = scalar_select %p252, %s20, 3
        %s254 = smul.addr %s253, 2
        %s255 = smul.addr %s251, 8
        %s256 = sadd.s32 %s254, %s255
        %s257 = smul.addr %s256, 8
        %s258 = scalar_lea.vmem %s3, %s257
      $region32: #{fwd.4} parent=15 // pred_fallthru
        _
    $region16: #{fwd.4} parent=5 // pred_fallthru
      _
    %p259 = scmp.le.s32.totalorder 1, %s12
    %p260 = scmp.lt.s32.totalorder %s12, 17
    %p261 = pnand %p259, %p260
    %p262 = pneg %p261
    // Predicated region
    $region33: #{fwd.4} parent=5 // pred_check
      _
    $region34: #{fwd.4} parent=5 // pred_check_branch
      %264 = sbr.rel (%p261) target = $region36
    $region35: #{fwd.4} parent=5 // pred_region
      %s265 = ssub.s32 %s12, 1
      %p266 = scmp.lt.s32.totalorder %s21, 3
      %s267 = scalar_select %p266, %s21, 3
      %p268 = scmp.lt.s32.totalorder %s22, 3
      %s269 = scalar_select %p268, %s22, 3
      %s270 = smul.addr %s269, 2
      %s271 = smul.addr %s267, 8
      %s272 = sadd.s32 %s270, %s271
      %s273 = smul.addr %s272, 4
      %s274 = scalar_lea.vmem %s0, %s273
      %p275 = pneg %p52
      %p276 = pneg %p49
      %p277 = scmp.lt.s32.totalorder %s21, 3
      %s278 = scalar_select %p277, %s21, 3
      %p279 = scmp.lt.s32.totalorder %s22, 3
      %s280 = scalar_select %p279, %s22, 3
      %s281 = smul.addr %s280, 2
      %s282 = smul.addr %s278, 8
      %s283 = sadd.s32 %s281, %s282
      %s284 = smul.addr %s283, 4
      %s285 = scalar_lea.vmem %s1, %s284
      %p286 = pneg %p80
      %p287 = pneg %p77
      %p288 = scmp.lt.s32.totalorder %s21, 3
      %s289 = scalar_select %p288, %s21, 3
      %p290 = scmp.lt.s32.totalorder %s22, 3
      %s291 = scalar_select %p290, %s22, 3
      %s292 = smul.addr %s291, 2
      %s293 = smul.addr %s289, 8
      %s294 = sadd.s32 %s292, %s293
      %s295 = smul.addr %s294, 4
      %s296 = scalar_lea.vmem %s2, %s295
      %p297 = pneg %p108
      %p298 = pneg %p105
      %p299 = scmp.lt.s32.totalorder %s21, 3
      %s300 = scalar_select %p299, %s21, 3
      %p301 = scmp.lt.s32.totalorder %s22, 3
      %s302 = scalar_select %p301, %s22, 3
      %s303 = smul.addr %s302, 2
      %s304 = smul.addr %s300, 8
      %s305 = sadd.s32 %s303, %s304
      %s306 = smul.addr %s305, 8
      %s307 = scalar_lea.vmem %s3, %s306
      %p308 = pneg %p136
      %p309 = pneg %p133
      %p310 = pneg %p164
      %p311 = pneg %p161
      %p312 = scmp.lt.s32.totalorder %s21, 3
      %s313 = scalar_select %p312, %s21, 3
      %p314 = scmp.lt.s32.totalorder %s22, 3
      %s315 = scalar_select %p314, %s22, 3
      %s316 = smul.addr %s315, 2
      %s317 = smul.addr %s313, 8
      %s318 = sadd.s32 %s316, %s317
      %s319 = smul.addr %s318, 4
      %s320 = scalar_lea.vmem %s4, %s319
      %p321 = pneg %p192
      %p322 = pneg %p189
      %p323 = scmp.lt.s32.totalorder %s21, 3
      %s324 = scalar_select %p323, %s21, 3
      %p325 = scmp.lt.s32.totalorder %s22, 3
      %s326 = scalar_select %p325, %s22, 3
      %s327 = smul.addr %s326, 2
      %s328 = smul.addr %s324, 8
      %s329 = sadd.s32 %s327, %s328
      %s330 = smul.addr %s329, 8
      %s331 = scalar_lea.vmem %s5, %s330
      %p332 = scmp.lt.s32.totalorder %s21, 3
      %s333 = scalar_select %p332, %s21, 3
      %p334 = scmp.lt.s32.totalorder %s22, 3
      %s335 = scalar_select %p334, %s22, 3
      %s336 = smul.addr %s335, 2
      %s337 = smul.addr %s333, 8
      %s338 = sadd.s32 %s336, %s337
      %s339 = smul.addr %s338, 4
      %s340 = scalar_lea.vmem %s0, %s339
      %p341 = scmp.lt.s32.totalorder %s21, 3
      %s342 = scalar_select %p341, %s21, 3
      %p343 = scmp.lt.s32.totalorder %s22, 3
      %s344 = scalar_select %p343, %s22, 3
      %s345 = smul.addr %s344, 2
      %s346 = smul.addr %s342, 8
      %s347 = sadd.s32 %s345, %s346
      %s348 = smul.addr %s347, 4
      %s349 = scalar_lea.vmem %s1, %s348
      %p350 = scmp.lt.s32.totalorder %s21, 3
      %s351 = scalar_select %p350, %s21, 3
      %p352 = scmp.lt.s32.totalorder %s22, 3
      %s353 = scalar_select %p352, %s22, 3
      %s354 = smul.addr %s353, 2
      %s355 = smul.addr %s351, 8
      %s356 = sadd.s32 %s354, %s355
      %s357 = smul.addr %s356, 4
      %s358 = scalar_lea.vmem %s2, %s357
      %p359 = scmp.lt.s32.totalorder %s21, 3
      %s360 = scalar_select %p359, %s21, 3
      %p361 = scmp.lt.s32.totalorder %s22, 3
      %s362 = scalar_select %p361, %s22, 3
      %s363 = smul.addr %s362, 2
      %s364 = smul.addr %s360, 8
      %s365 = sadd.s32 %s363, %s364
      %s366 = smul.addr %s365, 8
      %s367 = scalar_lea.vmem %s3, %s366
      %p368 = scmp.lt.s32.totalorder %s21, 3
      %s369 = scalar_select %p368, %s21, 3
      %p370 = scmp.lt.s32.totalorder %s22, 3
      %s371 = scalar_select %p370, %s22, 3
      %s372 = smul.addr %s371, 2
      %s373 = smul.addr %s369, 8
      %s374 = sadd.s32 %s372, %s373
      %s375 = smul.addr %s374, 4
      %s376 = scalar_lea.vmem %s4, %s375
      %p377 = scmp.lt.s32.totalorder %s21, 3
      %s378 = scalar_select %p377, %s21, 3
      %p379 = scmp.lt.s32.totalorder %s22, 3
      %s380 = scalar_select %p379, %s22, 3
      %s381 = smul.addr %s380, 2
      %s382 = smul.addr %s378, 8
      %s383 = sadd.s32 %s381, %s382
      %s384 = smul.addr %s383, 8
      %s385 = scalar_lea.vmem %s5, %s384
      %v387 = vld [vmem:[%s340] sm:$0xf]
      %v388 = vld [vmem:[%s340 + $0x4] sm:$0xf]
      %v389 = vld [vmem:[%s349] sm:$0xf]
      %v390 = vld [vmem:[%s349 + $0x4] sm:$0xf]
      %v391 = vld [vmem:[%s358] sm:$0xf]
      %v392 = vld [vmem:[%s358 + $0x4] sm:$0xf]
      %v393 = vld [vmem:[%s367] sm:$0xff]
      %v394 = vld [vmem:[%s367 + $0x8] sm:$0xff]
      %v397 = vunpack.c.l.b16 %v387
      %v398 = vunpack.c.l.b16 %v388
      %v399 = vpack.c.b16 %v398, %v397
      %v402 = vunpack.c.l.b16 %v389
      %v403 = vunpack.c.l.b16 %v390
      %v404 = vpack.c.b16 %v403, %v402
      %vm405 = vcmask 64512
      %v407 = vsel %vm405, %v399, 0
      %v410 = vsel %vm405, %v404, 0
      %412 = vmatprep.subr.bf16.mxu0 0
      %413 = vmatpush1.bf16.xpose.msra.mxu0 %v410
      %414 = vmatprep.subr.bf16.mxu0 0
      %415 = vmatpush1.bf16.xpose.msra.mxu0 0
      %416 = vmatprep.subr.bf16.mxu0 0
      %417 = vmatpush1.bf16.xpose.msra.mxu0 0
      %418 = vmatprep.subr.bf16.mxu0 0
      %419 = vmatpush1.bf16.xpose.msra.mxu0 0
      %420 = vmatprep.subr.bf16.mxu0 0
      %421 = vmatpush1.bf16.xpose.msra.mxu0 0
      %422 = vmatprep.subr.bf16.mxu0 0
      %423 = vmatpush1.bf16.xpose.msra.mxu0 0
      %424 = vmatprep.subr.bf16.mxu0 0
      %425 = vmatpush1.bf16.xpose.msra.mxu0 0
      %426 = vmatprep.subr.bf16.mxu0 0
      %427 = vmatpush1.bf16.xpose.msra.mxu0 0
      %428 = vmatprep.subr.bf16.mxu0 0
      %429 = vmatpush1.bf16.xpose.msra.mxu0 0
      %430 = vmatprep.subr.bf16.mxu0 0
      %431 = vmatpush1.bf16.xpose.msra.mxu0 0
      %432 = vmatprep.subr.bf16.mxu0 0
      %433 = vmatpush1.bf16.xpose.msra.mxu0 0
      %434 = vmatprep.subr.bf16.mxu0 0
      %435 = vmatpush1.bf16.xpose.msra.mxu0 0
      %436 = vmatprep.subr.bf16.mxu0 0
      %437 = vmatpush1.bf16.xpose.msra.mxu0 0
      %438 = vmatprep.subr.bf16.mxu0 0
      %439 = vmatpush1.bf16.xpose.msra.mxu0 0
      %440 = vmatprep.subr.bf16.mxu0 0
      %441 = vmatpush1.bf16.xpose.msra.mxu0 0
      %442 = vmatprep.subr.bf16.mxu0 0
      %443 = vmatpush1.bf16.xpose.msra.mxu0 0
      %444 = vmatprep.mubr.bf16.mxu0 0
      %445 = vmatmul.mubr.bf16.gmra.mrb[0].mxu0 %v407
      %v446 = vpop.f32.mrb[0].mxu0
      %v447 = vadd.f32 %v393, %v446
      %v448 = vpop.f32.mrb[0].mxu0
      %v449 = vpop.f32.mrb[0].mxu0
      %v450 = vadd.f32 %v394, %v449
      %v451 = vpop.f32.mrb[0].mxu0
      %452 = vdwg.mxu0
      %vm453 = vcmask 130048
      %454 = vst.msk [vmem:[%s385] sm:$0xff] %vm453, %v447
      %455 = vst.msk [vmem:[%s385 + $0x8] sm:$0xff] %vm453, %v450
      %v456 = vsel %vm453, %v447, -inf
      %v457 = vsel %vm453, %v450, -inf
      %v458 = vmax.f32 %v456, %v457
      %v459 = vrot.slane %v458, 4
      %v460 = vmax.f32 %v458, %v459
      %v461 = vrot.slane %v460, 2
      %v462 = vmax.f32 %v460, %v461
      %v463 = vrot.slane %v462, 1
      %v464 = vmax.f32 %v462, %v463
      %v465 = vsub.f32 %v447, %v464
      %v466 = vsub.f32 %v450, %v464
      %v467 = vmul.f32 %v465, 1.442695
      %v468 = vpow.pop %v467
      %v469 = vmul.f32 %v466, 1.442695
      %v470 = vpow.pop %v469
      %v471 = vsel %vm453, %v468, 0.0
      %v472 = vsel %vm453, %v470, 0.0
      %v473 = vadd.f32 %v471, %v472
      %v474 = vrot.slane %v473, 4
      %v475 = vadd.f32 %v473, %v474
      %v476 = vrot.slane %v475, 2
      %v477 = vadd.f32 %v475, %v476
      %v478 = vrot.slane %v477, 1
      %v479 = vadd.f32 %v477, %v478
      %v480 = vrcp.pop %v479
      %v481 = vmul.f32 %v468, %v480
      %v482 = vmul.f32 %v470, %v480
      %v483 = vpack.c.bf16 %v482, %v481
      %v486 = vunpack.c.l.b16 %v391
      %v487 = vunpack.c.l.b16 %v392
      %v488 = vpack.c.b16 %v487, %v486
      %v491 = vsel %vm453, %v483, 0
      %493 = vmatprep.subr.bf16.mxu0 0
      %494 = vmatpush1.bf16.msra.mxu0 %v488
      %495 = vmatprep.subr.bf16.mxu0 0
      %496 = vmatpush1.bf16.msra.mxu0 0
      %497 = vmatprep.subr.bf16.mxu0 0
      %498 = vmatpush1.bf16.msra.mxu0 0
      %499 = vmatprep.subr.bf16.mxu0 0
      %500 = vmatpush1.bf16.msra.mxu0 0
      %501 = vmatprep.subr.bf16.mxu0 0
      %502 = vmatpush1.bf16.msra.mxu0 0
      %503 = vmatprep.subr.bf16.mxu0 0
      %504 = vmatpush1.bf16.msra.mxu0 0
      %505 = vmatprep.subr.bf16.mxu0 0
      %506 = vmatpush1.bf16.msra.mxu0 0
      %507 = vmatprep.subr.bf16.mxu0 0
      %508 = vmatpush1.bf16.msra.mxu0 0
      %509 = vmatprep.subr.bf16.mxu0 0
      %510 = vmatpush1.bf16.msra.mxu0 0
      %511 = vmatprep.subr.bf16.mxu0 0
      %512 = vmatpush1.bf16.msra.mxu0 0
      %513 = vmatprep.subr.bf16.mxu0 0
      %514 = vmatpush1.bf16.msra.mxu0 0
      %515 = vmatprep.subr.bf16.mxu0 0
      %516 = vmatpush1.bf16.msra.mxu0 0
      %517 = vmatprep.subr.bf16.mxu0 0
      %518 = vmatpush1.bf16.msra.mxu0 0
      %519 = vmatprep.subr.bf16.mxu0 0
      %520 = vmatpush1.bf16.msra.mxu0 0
      %521 = vmatprep.subr.bf16.mxu0 0
      %522 = vmatpush1.bf16.msra.mxu0 0
      %523 = vmatprep.subr.bf16.mxu0 0
      %524 = vmatpush1.bf16.msra.mxu0 0
      %525 = vmatprep.mubr.bf16.mxu0 0
      %526 = vmatmul.mubr.bf16.gmra.mrb[0].mxu0 %v491
      %v527 = vpop.f32.mrb[0].mxu0
      %v528 = vadd.f32 0.0, %v527
      %v529 = vpop.f32.mrb[0].mxu0
      %v530 = vpop.f32.mrb[0].mxu0
      %v531 = vadd.f32 0.0, %v530
      %v532 = vpop.f32.mrb[0].mxu0
      %533 = vdwg.mxu0
      %v534 = vpack.c.bf16 %v531, %v528
      %v536 = vunpack.c.l.b16 %v534
      %v537 = vunpack.c.h.b16 %v534
      %v538 = vpack.c.b16 %v536, %v536
      %v539 = vpack.c.b16 %v537, %v537
      %vm542 = vcmask 60416
      %543 = vst.msk [vmem:[%s376] sm:$0xf] %vm542, %v538
      %544 = vst.msk [vmem:[%s376 + $0x4] sm:$0xf] %vm542, %v539
      %p545 = scmp.lt.s32.totalorder %s21, 3
      %s546 = scalar_select %p545, %s21, 3
      %p547 = scmp.lt.s32.totalorder %s22, 3
      %s548 = scalar_select %p547, %s22, 3
      %s549 = smul.addr %s548, 2
      %s550 = smul.addr %s546, 8
      %s551 = sadd.s32 %s549, %s550
      %s552 = smul.addr %s551, 4
      %s553 = scalar_lea.vmem %s4, %s552
      %p554 = scmp.lt.s32.totalorder %s21, 3
      %s555 = scalar_select %p554, %s21, 3
      %p556 = scmp.lt.s32.totalorder %s22, 3
      %s557 = scalar_select %p556, %s22, 3
      %s558 = smul.addr %s557, 2
      %s559 = smul.addr %s555, 8
      %s560 = sadd.s32 %s558, %s559
      %s561 = smul.addr %s560, 8
      %s562 = scalar_lea.vmem %s5, %s561
      // Predicated region
      $region37: #{fwd.4} parent=35 // pred_check
        %p563 = pneg %p161
      $region38: #{fwd.4} parent=35 // pred_check_branch
        %565 = sbr.rel (%p563) target = $region40
      $region39: #{fwd.4} parent=35 // pred_region
        _
      $region40: #{fwd.4} parent=35 // pred_fallthru
        _
      // Predicated region
      $region41: #{fwd.4} parent=35 // pred_check
        %p566 = pneg %p189
      $region42: #{fwd.4} parent=35 // pred_check_branch
        %568 = sbr.rel (%p566) target = $region44
      $region43: #{fwd.4} parent=35 // pred_region
        _
      $region44: #{fwd.4} parent=35 // pred_fallthru
        _
    $region36: #{fwd.4} parent=5 // pred_fallthru
      _
    %p569 = scmp.le.s32.totalorder 2, %s12
    // Predicated region
    $region45: #{fwd.4} parent=5 // pred_check
      %p570 = pneg %p569
    $region46: #{fwd.4} parent=5 // pred_check_branch
      %572 = sbr.rel (%p570) target = $region48
    $region47: #{fwd.4} parent=5 // pred_region
      %s573 = ssub.s32 %s12, 2
      // Predicated region
      $region49: #{fwd.4} parent=47 // pred_check
        %p574 = pneg %p167
      $region50: #{fwd.4} parent=47 // pred_check_branch
        %576 = sbr.rel (%p574) target = $region52
      $region51: #{fwd.4} parent=47 // pred_region
        %p577 = scmp.lt.s32.totalorder %s23, 3
        %s578 = scalar_select %p577, %s23, 3
        %p579 = scmp.lt.s32.totalorder %s24, 3
        %s580 = scalar_select %p579, %s24, 3
        %s581 = smul.addr %s580, 2
        %s582 = smul.addr %s578, 8
        %s583 = sadd.s32 %s581, %s582
        %s584 = smul.addr %s583, 4
        %s585 = scalar_lea.vmem %s4, %s584
      $region52: #{fwd.4} parent=47 // pred_fallthru
        _
      // Predicated region
      $region53: #{fwd.4} parent=47 // pred_check
        %p586 = pneg %p195
      $region54: #{fwd.4} parent=47 // pred_check_branch
        %588 = sbr.rel (%p586) target = $region56
      $region55: #{fwd.4} parent=47 // pred_region
        %p589 = scmp.lt.s32.totalorder %s23, 3
        %s590 = scalar_select %p589, %s23, 3
        %p591 = scmp.lt.s32.totalorder %s24, 3
        %s592 = scalar_select %p591, %s24, 3
        %s593 = smul.addr %s592, 2
        %s594 = smul.addr %s590, 8
        %s595 = sadd.s32 %s593, %s594
        %s596 = smul.addr %s595, 8
        %s597 = scalar_lea.vmem %s5, %s596
      $region56: #{fwd.4} parent=47 // pred_fallthru
        _
    $region48: #{fwd.4} parent=5 // pred_fallthru
      _
  $region6: #{fwd.4} parent=0 // loop_footer
    %s16 = sadd.s32 1, %s12
  $region7: #{fwd.4} parent=0 // loop_footer_branch
    %11 = sbr.rel target = $region3
  $region8: #{fwd.4} parent=0 // loop_exit
    _

// kernel: fwd.3
$region0: #{fwd.3}
  #allocation0 [shape = 'u32[]', space=smem, size = 0x4, offset = 0x4, fixed_abs, tag = 'smem constant byte address 0x4 - core index']
  #allocation1 [shape = 'u32[144,128]{1,0:T(1,128)}', space=vmem, size = 0x12000, scoped, tag = 'internal scratch']
  %s0 = inlined_call_operand.vmem [shape: f32[4,16,32], index: 0, kind: input, shape index: {}]
  %s1 = inlined_call_operand.vmem [shape: bf16[4,32,8], index: 1, kind: input, shape index: {}]
  %s2 = inlined_call_operand.vmem [shape: bf16[4,32,8], index: 2, kind: input, shape index: {}]
  %s3 = inlined_call_operand.vmem [shape: bf16[4,32,8], index: 3, kind: input, shape index: {}]
  %s4 = inlined_call_operand.vmem [shape: bf16[4,4,16,8], index: 4, kind: output, shape index: {0}]
  %s5 = inlined_call_operand.vmem [shape: bf16[4,4,16,8], index: 5, kind: output, shape index: {1}]
  %s6 = inlined_call_operand.vmem [shape: bf16[4,4,16,8], index: 6, kind: output, shape index: {2}]
  %7 = xla_tuple %s4, %s5, %s6
  %s8 = sld [smem:[#allocation0]]
  $region65: #{fwd.3} parent=0
    _
  %s10 = ssub.s32 1, %s8
  %s11 = scalar_select 0, %s10, %s8
  loop: start=0, step=1, limit=6
  $region2: #{fwd.3} parent=0 // loop_pre_header
    _
  $region3: #{fwd.3} parent=0 // loop_header
    %s13 = sphi 0, %s17
    %p14 = scmp.ge.s32.totalorder %s13, 6
    %s23 = sphi 0, %s25
    %s26 = sphi 0, %s23
    %s27 = sphi 0, %s26
    %s43 = sphi 0, %s27
    %s47 = sphi 0, %s47
    %s49 = sphi 0, %s47
    %s50 = sphi 0, %s49
    %s64 = sphi 0, %s50
    %s68 = sphi 0, %s68
    %s70 = sphi 0, %s68
    %s71 = sphi 0, %s70
    %s85 = sphi 0, %s71
    %s89 = sphi 0, %s89
    %s91 = sphi 0, %s89
    %s92 = sphi 0, %s91
    %s106 = sphi 0, %s92
    %s112 = sphi 0, %s114
    %s115 = sphi 0, %s112
    %s116 = sphi 0, %s115
    %s132 = sphi 0, %s116
    %s138 = sphi 0, %s140
    %s141 = sphi 0, %s138
    %s142 = sphi 0, %s141
    %s158 = sphi 0, %s142
    %s164 = sphi 0, %s166
    %s167 = sphi 0, %s164
    %s168 = sphi 0, %s167
    %s184 = sphi 0, %s168
  $region4: #{fwd.3} parent=0 // loop_header_branch
    %16 = sbr.rel (%p14) target = $region8
  $region5: #{fwd.3} parent=0 // loop_body
    %s18 = ssub.s32 %s13, 1
    %s19 = ssub.s32 %s13, 2
    %s20 = sadd.s32 %s13, 1
    %s21 = ssub.s32 %s13, %s20
    %p22 = scmp.eq.s32.totalorder %s21, 0
    %s24 = sadd.s32 %s23, 1
    %s25 = scalar_select %p22, %s23, %s24
    %p28 = pneg %p22
    %p29 = scmp.eq.s32.totalorder %s13, 3
    %p30 = por %p28, %p29
    %p31 = scmp.ne.s32.totalorder %s23, %s26
    %p32 = scmp.eq.s32.totalorder %s13, 0
    %p33 = por %p31, %p32
    %p34 = scmp.ne.s32.totalorder %s23, %s26
    %p35 = scmp.eq.s32.totalorder %s18, 3
    %p36 = por %p34, %p35
    %p37 = scmp.ne.s32.totalorder %s26, %s27
    %p38 = scmp.eq.s32.totalorder %s18, 0
    %p39 = por %p37, %p38
    %p40 = scmp.ne.s32.totalorder %s26, %s27
    %p41 = scmp.eq.s32.totalorder %s19, 3
    %p42 = por %p40, %p41
    %p44 = scmp.ne.s32.totalorder %s27, %s43
    %p45 = scmp.eq.s32.totalorder %s19, 0
    %p46 = por %p44, %p45
    %s48 = sadd.s32 %s47, 1
    %p51 = scmp.eq.s32.totalorder %s13, 3
    %p52 = scmp.ne.s32.totalorder %s47, %s49
    %p53 = scmp.eq.s32.totalorder %s13, 0
    %p54 = por %p52, %p53
    %p55 = scmp.ne.s32.totalorder %s47, %s49
    %p56 = scmp.eq.s32.totalorder %s18, 3
    %p57 = por %p55, %p56
    %p58 = scmp.ne.s32.totalorder %s49, %s50
    %p59 = scmp.eq.s32.totalorder %s18, 0
    %p60 = por %p58, %p59
    %p61 = scmp.ne.s32.totalorder %s49, %s50
    %p62 = scmp.eq.s32.totalorder %s19, 3
    %p63 = por %p61, %p62
    %p65 = scmp.ne.s32.totalorder %s50, %s64
    %p66 = scmp.eq.s32.totalorder %s19, 0
    %p67 = por %p65, %p66
    %s69 = sadd.s32 %s68, 1
    %p72 = scmp.eq.s32.totalorder %s13, 3
    %p73 = scmp.ne.s32.totalorder %s68, %s70
    %p74 = scmp.eq.s32.totalorder %s13, 0
    %p75 = por %p73, %p74
    %p76 = scmp.ne.s32.totalorder %s68, %s70
    %p77 = scmp.eq.s32.totalorder %s18, 3
    %p78 = por %p76, %p77
    %p79 = scmp.ne.s32.totalorder %s70, %s71
    %p80 = scmp.eq.s32.totalorder %s18, 0
    %p81 = por %p79, %p80
    %p82 = scmp.ne.s32.totalorder %s70, %s71
    %p83 = scmp.eq.s32.totalorder %s19, 3
    %p84 = por %p82, %p83
    %p86 = scmp.ne.s32.totalorder %s71, %s85
    %p87 = scmp.eq.s32.totalorder %s19, 0
    %p88 = por %p86, %p87
    %s90 = sadd.s32 %s89, 1
    %p93 = scmp.eq.s32.totalorder %s13, 3
    %p94 = scmp.ne.s32.totalorder %s89, %s91
    %p95 = scmp.eq.s32.totalorder %s13, 0
    %p96 = por %p94, %p95
    %p97 = scmp.ne.s32.totalorder %s89, %s91
    %p98 = scmp.eq.s32.totalorder %s18, 3
    %p99 = por %p97, %p98
    %p100 = scmp.ne.s32.totalorder %s91, %s92
    %p101 = scmp.eq.s32.totalorder %s18, 0
    %p102 = por %p100, %p101
    %p103 = scmp.ne.s32.totalorder %s91, %s92
    %p104 = scmp.eq.s32.totalorder %s19, 3
    %p105 = por %p103, %p104
    %p107 = scmp.ne.s32.totalorder %s92, %s106
    %p108 = scmp.eq.s32.totalorder %s19, 0
    %p109 = por %p107, %p108
    %s110 = ssub.s32 %s13, %s20
    %p111 = scmp.eq.s32.totalorder %s110, 0
    %s113 = sadd.s32 %s112, 1
    %s114 = scalar_select %p111, %s112, %s113
    %p117 = pneg %p111
    %p118 = scmp.eq.s32.totalorder %s13, 3
    %p119 = por %p117, %p118
    %p120 = scmp.ne.s32.totalorder %s112, %s115
    %p121 = scmp.eq.s32.totalorder %s13, 0
    %p122 = por %p120, %p121
    %p123 = scmp.ne.s32.totalorder %s112, %s115
    %p124 = scmp.eq.s32.totalorder %s18, 3
    %p125 = por %p123, %p124
    %p126 = scmp.ne.s32.totalorder %s115, %s116
    %p127 = scmp.eq.s32.totalorder %s18, 0
    %p128 = por %p126, %p127
    %p129 = scmp.ne.s32.totalorder %s115, %s116
    %p130 = scmp.eq.s32.totalorder %s19, 3
    %p131 = por %p129, %p130
    %p133 = scmp.ne.s32.totalorder %s116, %s132
    %p134 = scmp.eq.s32.totalorder %s19, 0
    %p135 = por %p133, %p134
    %s136 = ssub.s32 %s13, %s20
    %p137 = scmp.eq.s32.totalorder %s136, 0
    %s139 = sadd.s32 %s138, 1
    %s140 = scalar_select %p137, %s138, %s139
    %p143 = pneg %p137
    %p144 = scmp.eq.s32.totalorder %s13, 3
    %p145 = por %p143, %p144
    %p146 = scmp.ne.s32.totalorder %s138, %s141
    %p147 = scmp.eq.s32.totalorder %s13, 0
    %p148 = por %p146, %p147
    %p149 = scmp.ne.s32.totalorder %s138, %s141
    %p150 = scmp.eq.s32.totalorder %s18, 3
    %p151 = por %p149, %p150
    %p152 = scmp.ne.s32.totalorder %s141, %s142
    %p153 = scmp.eq.s32.totalorder %s18, 0
    %p154 = por %p152, %p153
    %p155 = scmp.ne.s32.totalorder %s141, %s142
    %p156 = scmp.eq.s32.totalorder %s19, 3
    %p157 = por %p155, %p156
    %p159 = scmp.ne.s32.totalorder %s142, %s158
    %p160 = scmp.eq.s32.totalorder %s19, 0
    %p161 = por %p159, %p160
    %s162 = ssub.s32 %s13, %s20
    %p163 = scmp.eq.s32.totalorder %s162, 0
    %s165 = sadd.s32 %s164, 1
    %s166 = scalar_select %p163, %s164, %s165
    %p169 = pneg %p163
    %p170 = scmp.eq.s32.totalorder %s13, 3
    %p171 = por %p169, %p170
    %p172 = scmp.ne.s32.totalorder %s164, %s167
    %p173 = scmp.eq.s32.totalorder %s13, 0
    %p174 = por %p172, %p173
    %p175 = scmp.ne.s32.totalorder %s164, %s167
    %p176 = scmp.eq.s32.totalorder %s18, 3
    %p177 = por %p175, %p176
    %p178 = scmp.ne.s32.totalorder %s167, %s168
    %p179 = scmp.eq.s32.totalorder %s18, 0
    %p180 = por %p178, %p179
    %p181 = scmp.ne.s32.totalorder %s167, %s168
    %p182 = scmp.eq.s32.totalorder %s19, 3
    %p183 = por %p181, %p182
    %p185 = scmp.ne.s32.totalorder %s168, %s184
    %p186 = scmp.eq.s32.totalorder %s19, 0
    %p187 = por %p185, %p186
    %p188 = scmp.le.s32.totalorder 1, %s13
    %p189 = scmp.lt.s32.totalorder %s13, 5
    %p190 = pnand %p188, %p189
    %p191 = pneg %p190
    // Predicated region
    $region9: #{fwd.3} parent=5 // pred_check
      _
    $region10: #{fwd.3} parent=5 // pred_check_branch
      %193 = sbr.rel (%p190) target = $region12
    $region11: #{fwd.3} parent=5 // pred_region
      %s194 = ssub.s32 %s13, 1
      // Predicated region
      $region13: #{fwd.3} parent=11 // pred_check
        %p195 = pneg %p60
      $region14: #{fwd.3} parent=11 // pred_check_branch
        %197 = sbr.rel (%p195) target = $region16
      $region15: #{fwd.3} parent=11 // pred_region
        _
      $region16: #{fwd.3} parent=11 // pred_fallthru
        _
      // Predicated region
      $region17: #{fwd.3} parent=11 // pred_check
        %p198 = pneg %p81
      $region18: #{fwd.3} parent=11 // pred_check_branch
        %200 = sbr.rel (%p198) target = $region20
      $region19: #{fwd.3} parent=11 // pred_region
        _
      $region20: #{fwd.3} parent=11 // pred_fallthru
        _
      // Predicated region
      $region21: #{fwd.3} parent=11 // pred_check
        %p201 = pneg %p102
      $region22: #{fwd.3} parent=11 // pred_check_branch
        %203 = sbr.rel (%p201) target = $region24
      $region23: #{fwd.3} parent=11 // pred_region
        _
      $region24: #{fwd.3} parent=11 // pred_fallthru
        _
    $region12: #{fwd.3} parent=5 // pred_fallthru
      _
    %p204 = scmp.lt.s32.totalorder %s13, 4
    // Predicated region
    $region25: #{fwd.3} parent=5 // pred_check
      %p205 = pneg %p204
    $region26: #{fwd.3} parent=5 // pred_check_branch
      %207 = sbr.rel (%p205) target = $region28
    $region27: #{fwd.3} parent=5 // pred_region
      // Predicated region
      $region29: #{fwd.3} parent=27 // pred_check
        %p208 = pneg %p33
      $region30: #{fwd.3} parent=27 // pred_check_branch
        %210 = sbr.rel (%p208) target = $region32
      $region31: #{fwd.3} parent=27 // pred_region
        %p211 = scmp.lt.s32.totalorder %s13, 3
        %s212 = scalar_select %p211, %s13, 3
        %s213 = smul.addr %s212, 2
        %s214 = smul.addr %s213, 8
        %s215 = scalar_lea.vmem %s0, %s214
      $region32: #{fwd.3} parent=27 // pred_fallthru
        _
    $region28: #{fwd.3} parent=5 // pred_fallthru
      _
    %p216 = scmp.le.s32.totalorder 1, %s13
    %p217 = scmp.lt.s32.totalorder %s13, 5
    %p218 = pnand %p216, %p217
    %p219 = pneg %p218
    // Predicated region
    $region33: #{fwd.3} parent=5 // pred_check
      _
    $region34: #{fwd.3} parent=5 // pred_check_branch
      %221 = sbr.rel (%p218) target = $region36
    $region35: #{fwd.3} parent=5 // pred_region
      %s222 = ssub.s32 %s13, 1
      %p223 = scmp.lt.s32.totalorder %s18, 3
      %s224 = scalar_select %p223, %s18, 3
      %s225 = smul.addr %s224, 2
      %s226 = smul.addr %s225, 8
      %s227 = scalar_lea.vmem %s0, %s226
      %p228 = pneg %p39
      %p229 = pneg %p36
      %p230 = pneg %p60
      %p231 = pneg %p57
      %p232 = pneg %p81
      %p233 = pneg %p78
      %p234 = pneg %p102
      %p235 = pneg %p99
      %p236 = pneg %p128
      %p237 = pneg %p125
      %p238 = scmp.lt.s32.totalorder %s18, 3
      %s239 = scalar_select %p238, %s18, 3
      %s240 = smul.addr %s239, 8
      %s241 = smul.addr %s240, 4
      %s242 = scalar_lea.vmem %s4, %s241
      %p243 = pneg %p154
      %p244 = pneg %p151
      %p245 = scmp.lt.s32.totalorder %s18, 3
      %s246 = scalar_select %p245, %s18, 3
      %s247 = smul.addr %s246, 8
      %s248 = smul.addr %s247, 4
      %s249 = scalar_lea.vmem %s5, %s248
      %p250 = pneg %p180
      %p251 = pneg %p177
      %p252 = scmp.lt.s32.totalorder %s18, 3
      %s253 = scalar_select %p252, %s18, 3
      %s254 = smul.addr %s253, 8
      %s255 = smul.addr %s254, 4
      %s256 = scalar_lea.vmem %s6, %s255
      %p257 = scmp.lt.s32.totalorder %s18, 3
      %s258 = scalar_select %p257, %s18, 3
      %s259 = smul.addr %s258, 2
      %s260 = smul.addr %s259, 8
      %s261 = scalar_lea.vmem %s0, %s260
      %p262 = scmp.lt.s32.totalorder %s18, 3
      %s263 = scalar_select %p262, %s18, 3
      %s264 = smul.addr %s263, 8
      %s265 = smul.addr %s264, 4
      %s266 = scalar_lea.vmem %s4, %s265
      %p267 = scmp.lt.s32.totalorder %s18, 3
      %s268 = scalar_select %p267, %s18, 3
      %s269 = smul.addr %s268, 8
      %s270 = smul.addr %s269, 4
      %s271 = scalar_lea.vmem %s5, %s270
      %p272 = scmp.lt.s32.totalorder %s18, 3
      %s273 = scalar_select %p272, %s18, 3
      %s274 = smul.addr %s273, 8
      %s275 = smul.addr %s274, 4
      %s276 = scalar_lea.vmem %s6, %s275
      %v278 = vld [vmem:[%s261] sm:$0xff]
      %v279 = vld [vmem:[%s261 + $0x8] sm:$0xff]
      %v280 = vpack.c.bf16 %v279, %v278
      %v281 = vld [vmem:[%s1] sm:$0xf]
      %v282 = vld [vmem:[%s1 + $0x4] sm:$0xf]
      %v283 = vld [vmem:[%s1 + $0x8] sm:$0xf]
      %v284 = vld [vmem:[%s1 + $0xc] sm:$0xf]
      %v289 = vunpack.c.l.b16 %v281
      %v290 = vunpack.c.l.b16 %v282
      %v291 = vunpack.c.l.b16 %v283
      %v292 = vunpack.c.l.b16 %v284
      %v293 = vpack.c.b16 %v290, %v289
      %v294 = vpack.c.b16 %v292, %v291
      %vm297 = vcmask 261120
      %v299 = vsel %vm297, %v280, 0
      %301 = vmatprep.subr.bf16.mxu0 0
      %302 = vmatpush1.bf16.msra.mxu0 %v293
      %303 = vmatprep.subr.bf16.mxu0 0
      %304 = vmatpush1.bf16.msra.mxu0 %v294
      %305 = vmatprep.subr.bf16.mxu0 0
      %306 = vmatpush1.bf16.msra.mxu0 0
      %307 = vmatprep.subr.bf16.mxu0 0
      %308 = vmatpush1.bf16.msra.mxu0 0
      %309 = vmatprep.subr.bf16.mxu0 0
      %310 = vmatpush1.bf16.msra.mxu0 0
      %311 = vmatprep.subr.bf16.mxu0 0
      %312 = vmatpush1.bf16.msra.mxu0 0
      %313 = vmatprep.subr.bf16.mxu0 0
      %314 = vmatpush1.bf16.msra.mxu0 0
      %315 = vmatprep.subr.bf16.mxu0 0
      %316 = vmatpush1.bf16.msra.mxu0 0
      %317 = vmatprep.subr.bf16.mxu0 0
      %318 = vmatpush1.bf16.msra.mxu0 0
      %319 = vmatprep.subr.bf16.mxu0 0
      %320 = vmatpush1.bf16.msra.mxu0 0
      %321 = vmatprep.subr.bf16.mxu0 0
      %322 = vmatpush1.bf16.msra.mxu0 0
      %323 = vmatprep.subr.bf16.mxu0 0
      %324 = vmatpush1.bf16.msra.mxu0 0
      %325 = vmatprep.subr.bf16.mxu0 0
      %326 = vmatpush1.bf16.msra.mxu0 0
      %327 = vmatprep.subr.bf16.mxu0 0
      %328 = vmatpush1.bf16.msra.mxu0 0
      %329 = vmatprep.subr.bf16.mxu0 0
      %330 = vmatpush1.bf16.msra.mxu0 0
      %331 = vmatprep.subr.bf16.mxu0 0
      %332 = vmatpush1.bf16.msra.mxu0 0
      %333 = vmatprep.mubr.bf16.mxu0 0
      %334 = vmatmul.mubr.bf16.gmra.mrb[0].mxu0 %v299
      %v335 = vpop.f32.mrb[0].mxu0
      %v336 = vadd.f32 0.0, %v335
      %v337 = vpop.f32.mrb[0].mxu0
      %v338 = vpop.f32.mrb[0].mxu0
      %v339 = vadd.f32 0.0, %v338
      %v340 = vpop.f32.mrb[0].mxu0
      %341 = vdwg.mxu0
      %v342 = vpack.c.bf16 %v339, %v336
      %v344 = vunpack.c.l.b16 %v342
      %v345 = vunpack.c.h.b16 %v342
      %v346 = vpack.c.b16 %v344, %v344
      %v347 = vpack.c.b16 %v345, %v345
      %vm350 = vcmask 60416
      %351 = vst.msk [vmem:[%s266] sm:$0xf] %vm350, %v346
      %352 = vst.msk [vmem:[%s266 + $0x4] sm:$0xf] %vm350, %v347
      %v353 = vld [vmem:[%s2] sm:$0xf]
      %v354 = vld [vmem:[%s2 + $0x4] sm:$0xf]
      %v355 = vld [vmem:[%s2 + $0x8] sm:$0xf]
      %v356 = vld [vmem:[%s2 + $0xc] sm:$0xf]
      %v361 = vunpack.c.l.b16 %v353
      %v362 = vunpack.c.l.b16 %v354
      %v363 = vunpack.c.l.b16 %v355
      %v364 = vunpack.c.l.b16 %v356
      %v365 = vpack.c.b16 %v362, %v361
      %v366 = vpack.c.b16 %v364, %v363
      %369 = vmatprep.subr.bf16.mxu0 0
      %370 = vmatpush1.bf16.msra.mxu0 %v365
      %371 = vmatprep.subr.bf16.mxu0 0
      %372 = vmatpush1.bf16.msra.mxu0 %v366
      %373 = vmatprep.subr.bf16.mxu0 0
      %374 = vmatpush1.bf16.msra.mxu0 0
      %375 = vmatprep.subr.bf16.mxu0 0
      %376 = vmatpush1.bf16.msra.mxu0 0
      %377 = vmatprep.subr.bf16.mxu0 0
      %378 = vmatpush1.bf16.msra.mxu0 0
      %379 = vmatprep.subr.bf16.mxu0 0
      %380 = vmatpush1.bf16.msra.mxu0 0
      %381 = vmatprep.subr.bf16.mxu0 0
      %382 = vmatpush1.bf16.msra.mxu0 0
      %383 = vmatprep.subr.bf16.mxu0 0
      %384 = vmatpush1.bf16.msra.mxu0 0
      %385 = vmatprep.subr.bf16.mxu0 0
      %386 = vmatpush1.bf16.msra.mxu0 0
      %387 = vmatprep.subr.bf16.mxu0 0
      %388 = vmatpush1.bf16.msra.mxu0 0
      %389 = vmatprep.subr.bf16.mxu0 0
      %390 = vmatpush1.bf16.msra.mxu0 0
      %391 = vmatprep.subr.bf16.mxu0 0
      %392 = vmatpush1.bf16.msra.mxu0 0
      %393 = vmatprep.subr.bf16.mxu0 0
      %394 = vmatpush1.bf16.msra.mxu0 0
      %395 = vmatprep.subr.bf16.mxu0 0
      %396 = vmatpush1.bf16.msra.mxu0 0
      %397 = vmatprep.subr.bf16.mxu0 0
      %398 = vmatpush1.bf16.msra.mxu0 0
      %399 = vmatprep.subr.bf16.mxu0 0
      %400 = vmatpush1.bf16.msra.mxu0 0
      %401 = vmatprep.mubr.bf16.mxu0 0
      %402 = vmatmul.mubr.bf16.gmra.mrb[0].mxu0 %v299
      %v403 = vpop.f32.mrb[0].mxu0
      %v404 = vadd.f32 0.0, %v403
      %v405 = vpop.f32.mrb[0].mxu0
      %v406 = vpop.f32.mrb[0].mxu0
      %v407 = vadd.f32 0.0, %v406
      %v408 = vpop.f32.mrb[0].mxu0
      %409 = vdwg.mxu0
      %v410 = vpack.c.bf16 %v407, %v404
      %v412 = vunpack.c.l.b16 %v410
      %v413 = vunpack.c.h.b16 %v410
      %v414 = vpack.c.b16 %v412, %v412
      %v415 = vpack.c.b16 %v413, %v413
      %418 = vst.msk [vmem:[%s271] sm:$0xf] %vm350, %v414
      %419 = vst.msk [vmem:[%s271 + $0x4] sm:$0xf] %vm350, %v415
      %v420 = vld [vmem:[%s3] sm:$0xf]
      %v421 = vld [vmem:[%s3 + $0x4] sm:$0xf]
      %v422 = vld [vmem:[%s3 + $0x8] sm:$0xf]
      %v423 = vld [vmem:[%s3 + $0xc] sm:$0xf]
      %v428 = vunpack.c.l.b16 %v420
      %v429 = vunpack.c.l.b16 %v421
      %v430 = vunpack.c.l.b16 %v422
      %v431 = vunpack.c.l.b16 %v423
      %v432 = vpack.c.b16 %v429, %v428
      %v433 = vpack.c.b16 %v431, %v430
      %436 = vmatprep.subr.bf16.mxu0 0
      %437 = vmatpush1.bf16.msra.mxu0 %v432
      %438 = vmatprep.subr.bf16.mxu0 0
      %439 = vmatpush1.bf16.msra.mxu0 %v433
      %440 = vmatprep.subr.bf16.mxu0 0
      %441 = vmatpush1.bf16.msra.mxu0 0
      %442 = vmatprep.subr.bf16.mxu0 0
      %443 = vmatpush1.bf16.msra.mxu0 0
      %444 = vmatprep.subr.bf16.mxu0 0
      %445 = vmatpush1.bf16.msra.mxu0 0
      %446 = vmatprep.subr.bf16.mxu0 0
      %447 = vmatpush1.bf16.msra.mxu0 0
      %448 = vmatprep.subr.bf16.mxu0 0
      %449 = vmatpush1.bf16.msra.mxu0 0
      %450 = vmatprep.subr.bf16.mxu0 0
      %451 = vmatpush1.bf16.msra.mxu0 0
      %452 = vmatprep.subr.bf16.mxu0 0
      %453 = vmatpush1.bf16.msra.mxu0 0
      %454 = vmatprep.subr.bf16.mxu0 0
      %455 = vmatpush1.bf16.msra.mxu0 0
      %456 = vmatprep.subr.bf16.mxu0 0
      %457 = vmatpush1.bf16.msra.mxu0 0
      %458 = vmatprep.subr.bf16.mxu0 0
      %459 = vmatpush1.bf16.msra.mxu0 0
      %460 = vmatprep.subr.bf16.mxu0 0
      %461 = vmatpush1.bf16.msra.mxu0 0
      %462 = vmatprep.subr.bf16.mxu0 0
      %463 = vmatpush1.bf16.msra.mxu0 0
      %464 = vmatprep.subr.bf16.mxu0 0
      %465 = vmatpush1.bf16.msra.mxu0 0
      %466 = vmatprep.subr.bf16.mxu0 0
      %467 = vmatpush1.bf16.msra.mxu0 0
      %468 = vmatprep.mubr.bf16.mxu0 0
      %469 = vmatmul.mubr.bf16.gmra.mrb[0].mxu0 %v299
      %v470 = vpop.f32.mrb[0].mxu0
      %v471 = vadd.f32 0.0, %v470
      %v472 = vpop.f32.mrb[0].mxu0
      %v473 = vpop.f32.mrb[0].mxu0
      %v474 = vadd.f32 0.0, %v473
      %v475 = vpop.f32.mrb[0].mxu0
      %476 = vdwg.mxu0
      %v477 = vpack.c.bf16 %v474, %v471
      %v479 = vunpack.c.l.b16 %v477
      %v480 = vunpack.c.h.b16 %v477
      %v481 = vpack.c.b16 %v479, %v479
      %v482 = vpack.c.b16 %v480, %v480
      %485 = vst.msk [vmem:[%s276] sm:$0xf] %vm350, %v481
      %486 = vst.msk [vmem:[%s276 + $0x4] sm:$0xf] %vm350, %v482
      %s487 = scalar_lea.vmem %s1, 16
      %v488 = vld [vmem:[%s487] sm:$0xf]
      %v489 = vld [vmem:[%s487 + $0x4] sm:$0xf]
      %v490 = vld [vmem:[%s487 + $0x8] sm:$0xf]
      %v491 = vld [vmem:[%s487 + $0xc] sm:$0xf]
      %v496 = vunpack.c.l.b16 %v488
      %v497 = vunpack.c.l.b16 %v489
      %v498 = vunpack.c.l.b16 %v490
      %v499 = vunpack.c.l.b16 %v491
      %v500 = vpack.c.b16 %v497, %v496
      %v501 = vpack.c.b16 %v499, %v498
      %504 = vmatprep.subr.bf16.mxu0 0
      %505 = vmatpush1.bf16.msra.mxu0 %v500
      %506 = vmatprep.subr.bf16.mxu0 0
      %507 = vmatpush1.bf16.msra.mxu0 %v501
      %508 = vmatprep.subr.bf16.mxu0 0
      %509 = vmatpush1.bf16.msra.mxu0 0
      %510 = vmatprep.subr.bf16.mxu0 0
      %511 = vmatpush1.bf16.msra.mxu0 0
      %512 = vmatprep.subr.bf16.mxu0 0
      %513 = vmatpush1.bf16.msra.mxu0 0
      %514 = vmatprep.subr.bf16.mxu0 0
      %515 = vmatpush1.bf16.msra.mxu0 0
      %516 = vmatprep.subr.bf16.mxu0 0
      %517 = vmatpush1.bf16.msra.mxu0 0
      %518 = vmatprep.subr.bf16.mxu0 0
      %519 = vmatpush1.bf16.msra.mxu0 0
      %520 = vmatprep.subr.bf16.mxu0 0
      %521 = vmatpush1.bf16.msra.mxu0 0
      %522 = vmatprep.subr.bf16.mxu0 0
      %523 = vmatpush1.bf16.msra.mxu0 0
      %524 = vmatprep.subr.bf16.mxu0 0
      %525 = vmatpush1.bf16.msra.mxu0 0
      %526 = vmatprep.subr.bf16.mxu0 0
      %527 = vmatpush1.bf16.msra.mxu0 0
      %528 = vmatprep.subr.bf16.mxu0 0
      %529 = vmatpush1.bf16.msra.mxu0 0
      %530 = vmatprep.subr.bf16.mxu0 0
      %531 = vmatpush1.bf16.msra.mxu0 0
      %532 = vmatprep.subr.bf16.mxu0 0
      %533 = vmatpush1.bf16.msra.mxu0 0
      %534 = vmatprep.subr.bf16.mxu0 0
      %535 = vmatpush1.bf16.msra.mxu0 0
      %536 = vmatprep.mubr.bf16.mxu0 0
      %537 = vmatmul.mubr.bf16.gmra.mrb[0].mxu0 %v299
      %v538 = vpop.f32.mrb[0].mxu0
      %v539 = vadd.f32 0.0, %v538
      %v540 = vpop.f32.mrb[0].mxu0
      %v541 = vpop.f32.mrb[0].mxu0
      %v542 = vadd.f32 0.0, %v541
      %v543 = vpop.f32.mrb[0].mxu0
      %544 = vdwg.mxu0
      %v545 = vpack.c.bf16 %v542, %v539
      %v547 = vunpack.c.l.b16 %v545
      %v548 = vunpack.c.h.b16 %v545
      %v549 = vpack.c.b16 %v547, %v547
      %v550 = vpack.c.b16 %v548, %v548
      %s553 = scalar_lea.vmem %s266, 8
      %554 = vst.msk [vmem:[%s553] sm:$0xf] %vm350, %v549
      %555 = vst.msk [vmem:[%s553 + $0x4] sm:$0xf] %vm350, %v550
      %s556 = scalar_lea.vmem %s2, 16
      %v557 = vld [vmem:[%s556] sm:$0xf]
      %v558 = vld [vmem:[%s556 + $0x4] sm:$0xf]
      %v559 = vld [vmem:[%s556 + $0x8] sm:$0xf]
      %v560 = vld [vmem:[%s556 + $0xc] sm:$0xf]
      %v565 = vunpack.c.l.b16 %v557
      %v566 = vunpack.c.l.b16 %v558
      %v567 = vunpack.c.l.b16 %v559
      %v568 = vunpack.c.l.b16 %v560
      %v569 = vpack.c.b16 %v566, %v565
      %v570 = vpack.c.b16 %v568, %v567
      %573 = vmatprep.subr.bf16.mxu0 0
      %574 = vmatpush1.bf16.msra.mxu0 %v569
      %575 = vmatprep.subr.bf16.mxu0 0
      %576 = vmatpush1.bf16.msra.mxu0 %v570
      %577 = vmatprep.subr.bf16.mxu0 0
      %578 = vmatpush1.bf16.msra.mxu0 0
      %579 = vmatprep.subr.bf16.mxu0 0
      %580 = vmatpush1.bf16.msra.mxu0 0
      %581 = vmatprep.subr.bf16.mxu0 0
      %582 = vmatpush1.bf16.msra.mxu0 0
      %583 = vmatprep.subr.bf16.mxu0 0
      %584 = vmatpush1.bf16.msra.mxu0 0
      %585 = vmatprep.subr.bf16.mxu0 0
      %586 = vmatpush1.bf16.msra.mxu0 0
      %587 = vmatprep.subr.bf16.mxu0 0
      %588 = vmatpush1.bf16.msra.mxu0 0
      %589 = vmatprep.subr.bf16.mxu0 0
      %590 = vmatpush1.bf16.msra.mxu0 0
      %591 = vmatprep.subr.bf16.mxu0 0
      %592 = vmatpush1.bf16.msra.mxu0 0
      %593 = vmatprep.subr.bf16.mxu0 0
      %594 = vmatpush1.bf16.msra.mxu0 0
      %595 = vmatprep.subr.bf16.mxu0 0
      %596 = vmatpush1.bf16.msra.mxu0 0
      %597 = vmatprep.subr.bf16.mxu0 0
      %598 = vmatpush1.bf16.msra.mxu0 0
      %599 = vmatprep.subr.bf16.mxu0 0
      %600 = vmatpush1.bf16.msra.mxu0 0
      %601 = vmatprep.subr.bf16.mxu0 0
      %602 = vmatpush1.bf16.msra.mxu0 0
      %603 = vmatprep.subr.bf16.mxu0 0
      %604 = vmatpush1.bf16.msra.mxu0 0
      %605 = vmatprep.mubr.bf16.mxu0 0
      %606 = vmatmul.mubr.bf16.gmra.mrb[0].mxu0 %v299
      %v607 = vpop.f32.mrb[0].mxu0
      %v608 = vadd.f32 0.0, %v607
      %v609 = vpop.f32.mrb[0].mxu0
      %v610 = vpop.f32.mrb[0].mxu0
      %v611 = vadd.f32 0.0, %v610
      %v612 = vpop.f32.mrb[0].mxu0
      %613 = vdwg.mxu0
      %v614 = vpack.c.bf16 %v611, %v608
      %v616 = vunpack.c.l.b16 %v614
      %v617 = vunpack.c.h.b16 %v614
      %v618 = vpack.c.b16 %v616, %v616
      %v619 = vpack.c.b16 %v617, %v617
      %s622 = scalar_lea.vmem %s271, 8
      %623 = vst.msk [vmem:[%s622] sm:$0xf] %vm350, %v618
      %624 = vst.msk [vmem:[%s622 + $0x4] sm:$0xf] %vm350, %v619
      %s625 = scalar_lea.vmem %s3, 16
      %v626 = vld [vmem:[%s625] sm:$0xf]
      %v627 = vld [vmem:[%s625 + $0x4] sm:$0xf]
      %v628 = vld [vmem:[%s625 + $0x8] sm:$0xf]
      %v629 = vld [vmem:[%s625 + $0xc] sm:$0xf]
      %v634 = vunpack.c.l.b16 %v626
      %v635 = vunpack.c.l.b16 %v627
      %v636 = vunpack.c.l.b16 %v628
      %v637 = vunpack.c.l.b16 %v629
      %v638 = vpack.c.b16 %v635, %v634
      %v639 = vpack.c.b16 %v637, %v636
      %642 = vmatprep.subr.bf16.mxu0 0
      %643 = vmatpush1.bf16.msra.mxu0 %v638
      %644 = vmatprep.subr.bf16.mxu0 0
      %645 = vmatpush1.bf16.msra.mxu0 %v639
      %646 = vmatprep.subr.bf16.mxu0 0
      %647 = vmatpush1.bf16.msra.mxu0 0
      %648 = vmatprep.subr.bf16.mxu0 0
      %649 = vmatpush1.bf16.msra.mxu0 0
      %650 = vmatprep.subr.bf16.mxu0 0
      %651 = vmatpush1.bf16.msra.mxu0 0
      %652 = vmatprep.subr.bf16.mxu0 0
      %653 = vmatpush1.bf16.msra.mxu0 0
      %654 = vmatprep.subr.bf16.mxu0 0
      %655 = vmatpush1.bf16.msra.mxu0 0
      %656 = vmatprep.subr.bf16.mxu0 0
      %657 = vmatpush1.bf16.msra.mxu0 0
      %658 = vmatprep.subr.bf16.mxu0 0
      %659 = vmatpush1.bf16.msra.mxu0 0
      %660 = vmatprep.subr.bf16.mxu0 0
      %661 = vmatpush1.bf16.msra.mxu0 0
      %662 = vmatprep.subr.bf16.mxu0 0
      %663 = vmatpush1.bf16.msra.mxu0 0
      %664 = vmatprep.subr.bf16.mxu0 0
      %665 = vmatpush1.bf16.msra.mxu0 0
      %666 = vmatprep.subr.bf16.mxu0 0
      %667 = vmatpush1.bf16.msra.mxu0 0
      %668 = vmatprep.subr.bf16.mxu0 0
      %669 = vmatpush1.bf16.msra.mxu0 0
      %670 = vmatprep.subr.bf16.mxu0 0
      %671 = vmatpush1.bf16.msra.mxu0 0
      %672 = vmatprep.subr.bf16.mxu0 0
      %673 = vmatpush1.bf16.msra.mxu0 0
      %674 = vmatprep.mubr.bf16.mxu0 0
      %675 = vmatmul.mubr.bf16.gmra.mrb[0].mxu0 %v299
      %v676 = vpop.f32.mrb[0].mxu0
      %v677 = vadd.f32 0.0, %v676
      %v678 = vpop.f32.mrb[0].mxu0
      %v679 = vpop.f32.mrb[0].mxu0
      %v680 = vadd.f32 0.0, %v679
      %v681 = vpop.f32.mrb[0].mxu0
      %682 = vdwg.mxu0
      %v683 = vpack.c.bf16 %v680, %v677
      %v685 = vunpack.c.l.b16 %v683
      %v686 = vunpack.c.h.b16 %v683
      %v687 = vpack.c.b16 %v685, %v685
      %v688 = vpack.c.b16 %v686, %v686
      %s691 = scalar_lea.vmem %s276, 8
      %692 = vst.msk [vmem:[%s691] sm:$0xf] %vm350, %v687
      %693 = vst.msk [vmem:[%s691 + $0x4] sm:$0xf] %vm350, %v688
      %s694 = scalar_lea.vmem %s1, 32
      %v695 = vld [vmem:[%s694] sm:$0xf]
      %v696 = vld [vmem:[%s694 + $0x4] sm:$0xf]
      %v697 = vld [vmem:[%s694 + $0x8] sm:$0xf]
      %v698 = vld [vmem:[%s694 + $0xc] sm:$0xf]
      %v703 = vunpack.c.l.b16 %v695
      %v704 = vunpack.c.l.b16 %v696
      %v705 = vunpack.c.l.b16 %v697
      %v706 = vunpack.c.l.b16 %v698
      %v707 = vpack.c.b16 %v704, %v703
      %v708 = vpack.c.b16 %v706, %v705
      %711 = vmatprep.subr.bf16.mxu0 0
      %712 = vmatpush1.bf16.msra.mxu0 %v707
      %713 = vmatprep.subr.bf16.mxu0 0
      %714 = vmatpush1.bf16.msra.mxu0 %v708
      %715 = vmatprep.subr.bf16.mxu0 0
      %716 = vmatpush1.bf16.msra.mxu0 0
      %717 = vmatprep.subr.bf16.mxu0 0
      %718 = vmatpush1.bf16.msra.mxu0 0
      %719 = vmatprep.subr.bf16.mxu0 0
      %720 = vmatpush1.bf16.msra.mxu0 0
      %721 = vmatprep.subr.bf16.mxu0 0
      %722 = vmatpush1.bf16.msra.mxu0 0
      %723 = vmatprep.subr.bf16.mxu0 0
      %724 = vmatpush1.bf16.msra.mxu0 0
      %725 = vmatprep.subr.bf16.mxu0 0
      %726 = vmatpush1.bf16.msra.mxu0 0
      %727 = vmatprep.subr.bf16.mxu0 0
      %728 = vmatpush1.bf16.msra.mxu0 0
      %729 = vmatprep.subr.bf16.mxu0 0
      %730 = vmatpush1.bf16.msra.mxu0 0
      %731 = vmatprep.subr.bf16.mxu0 0
      %732 = vmatpush1.bf16.msra.mxu0 0
      %733 = vmatprep.subr.bf16.mxu0 0
      %734 = vmatpush1.bf16.msra.mxu0 0
      %735 = vmatprep.subr.bf16.mxu0 0
      %736 = vmatpush1.bf16.msra.mxu0 0
      %737 = vmatprep.subr.bf16.mxu0 0
      %738 = vmatpush1.bf16.msra.mxu0 0
      %739 = vmatprep.subr.bf16.mxu0 0
      %740 = vmatpush1.bf16.msra.mxu0 0
      %741 = vmatprep.subr.bf16.mxu0 0
      %742 = vmatpush1.bf16.msra.mxu0 0
      %743 = vmatprep.mubr.bf16.mxu0 0
      %744 = vmatmul.mubr.bf16.gmra.mrb[0].mxu0 %v299
      %v745 = vpop.f32.mrb[0].mxu0
      %v746 = vadd.f32 0.0, %v745
      %v747 = vpop.f32.mrb[0].mxu0
      %v748 = vpop.f32.mrb[0].mxu0
      %v749 = vadd.f32 0.0, %v748
      %v750 = vpop.f32.mrb[0].mxu0
      %751 = vdwg.mxu0
      %v752 = vpack.c.bf16 %v749, %v746
      %v754 = vunpack.c.l.b16 %v752
      %v755 = vunpack.c.h.b16 %v752
      %v756 = vpack.c.b16 %v754, %v754
      %v757 = vpack.c.b16 %v755, %v755
      %s760 = scalar_lea.vmem %s266, 16
      %761 = vst.msk [vmem:[%s760] sm:$0xf] %vm350, %v756
      %762 = vst.msk [vmem:[%s760 + $0x4] sm:$0xf] %vm350, %v757
      %s763 = scalar_lea.vmem %s2, 32
      %v764 = vld [vmem:[%s763] sm:$0xf]
      %v765 = vld [vmem:[%s763 + $0x4] sm:$0xf]
      %v766 = vld [vmem:[%s763 + $0x8] sm:$0xf]
      %v767 = vld [vmem:[%s763 + $0xc] sm:$0xf]
      %v772 = vunpack.c.l.b16 %v764
      %v773 = vunpack.c.l.b16 %v765
      %v774 = vunpack.c.l.b16 %v766
      %v775 = vunpack.c.l.b16 %v767
      %v776 = vpack.c.b16 %v773, %v772
      %v777 = vpack.c.b16 %v775, %v774
      %780 = vmatprep.subr.bf16.mxu0 0
      %781 = vmatpush1.bf16.msra.mxu0 %v776
      %782 = vmatprep.subr.bf16.mxu0 0
      %783 = vmatpush1.bf16.msra.mxu0 %v777
      %784 = vmatprep.subr.bf16.mxu0 0
      %785 = vmatpush1.bf16.msra.mxu0 0
      %786 = vmatprep.subr.bf16.mxu0 0
      %787 = vmatpush1.bf16.msra.mxu0 0
      %788 = vmatprep.subr.bf16.mxu0 0
      %789 = vmatpush1.bf16.msra.mxu0 0
      %790 = vmatprep.subr.bf16.mxu0 0
      %791 = vmatpush1.bf16.msra.mxu0 0
      %792 = vmatprep.subr.bf16.mxu0 0
      %793 = vmatpush1.bf16.msra.mxu0 0
      %794 = vmatprep.subr.bf16.mxu0 0
      %795 = vmatpush1.bf16.msra.mxu0 0
      %796 = vmatprep.subr.bf16.mxu0 0
      %797 = vmatpush1.bf16.msra.mxu0 0
      %798 = vmatprep.subr.bf16.mxu0 0
      %799 = vmatpush1.bf16.msra.mxu0 0
      %800 = vmatprep.subr.bf16.mxu0 0
      %801 = vmatpush1.bf16.msra.mxu0 0
      %802 = vmatprep.subr.bf16.mxu0 0
      %803 = vmatpush1.bf16.msra.mxu0 0
      %804 = vmatprep.subr.bf16.mxu0 0
      %805 = vmatpush1.bf16.msra.mxu0 0
      %806 = vmatprep.subr.bf16.mxu0 0
      %807 = vmatpush1.bf16.msra.mxu0 0
      %808 = vmatprep.subr.bf16.mxu0 0
      %809 = vmatpush1.bf16.msra.mxu0 0
      %810 = vmatprep.subr.bf16.mxu0 0
      %811 = vmatpush1.bf16.msra.mxu0 0
      %812 = vmatprep.mubr.bf16.mxu0 0
      %813 = vmatmul.mubr.bf16.gmra.mrb[0].mxu0 %v299
      %v814 = vpop.f32.mrb[0].mxu0
      %v815 = vadd.f32 0.0, %v814
      %v816 = vpop.f32.mrb[0].mxu0
      %v817 = vpop.f32.mrb[0].mxu0
      %v818 = vadd.f32 0.0, %v817
      %v819 = vpop.f32.mrb[0].mxu0
      %820 = vdwg.mxu0
      %v821 = vpack.c.bf16 %v818, %v815
      %v823 = vunpack.c.l.b16 %v821
      %v824 = vunpack.c.h.b16 %v821
      %v825 = vpack.c.b16 %v823, %v823
      %v826 = vpack.c.b16 %v824, %v824
      %s829 = scalar_lea.vmem %s271, 16
      %830 = vst.msk [vmem:[%s829] sm:$0xf] %vm350, %v825
      %831 = vst.msk [vmem:[%s829 + $0x4] sm:$0xf] %vm350, %v826
      %s832 = scalar_lea.vmem %s3, 32
      %v833 = vld [vmem:[%s832] sm:$0xf]
      %v834 = vld [vmem:[%s832 + $0x4] sm:$0xf]
      %v835 = vld [vmem:[%s832 + $0x8] sm:$0xf]
      %v836 = vld [vmem:[%s832 + $0xc] sm:$0xf]
      %v841 = vunpack.c.l.b16 %v833
      %v842 = vunpack.c.l.b16 %v834
      %v843 = vunpack.c.l.b16 %v835
      %v844 = vunpack.c.l.b16 %v836
      %v845 = vpack.c.b16 %v842, %v841
      %v846 = vpack.c.b16 %v844, %v843
      %849 = vmatprep.subr.bf16.mxu0 0
      %850 = vmatpush1.bf16.msra.mxu0 %v845
      %851 = vmatprep.subr.bf16.mxu0 0
      %852 = vmatpush1.bf16.msra.mxu0 %v846
      %853 = vmatprep.subr.bf16.mxu0 0
      %854 = vmatpush1.bf16.msra.mxu0 0
      %855 = vmatprep.subr.bf16.mxu0 0
      %856 = vmatpush1.bf16.msra.mxu0 0
      %857 = vmatprep.subr.bf16.mxu0 0
      %858 = vmatpush1.bf16.msra.mxu0 0
      %859 = vmatprep.subr.bf16.mxu0 0
      %860 = vmatpush1.bf16.msra.mxu0 0
      %861 = vmatprep.subr.bf16.mxu0 0
      %862 = vmatpush1.bf16.msra.mxu0 0
      %863 = vmatprep.subr.bf16.mxu0 0
      %864 = vmatpush1.bf16.msra.mxu0 0
      %865 = vmatprep.subr.bf16.mxu0 0
      %866 = vmatpush1.bf16.msra.mxu0 0
      %867 = vmatprep.subr.bf16.mxu0 0
      %868 = vmatpush1.bf16.msra.mxu0 0
      %869 = vmatprep.subr.bf16.mxu0 0
      %870 = vmatpush1.bf16.msra.mxu0 0
      %871 = vmatprep.subr.bf16.mxu0 0
      %872 = vmatpush1.bf16.msra.mxu0 0
      %873 = vmatprep.subr.bf16.mxu0 0
      %874 = vmatpush1.bf16.msra.mxu0 0
      %875 = vmatprep.subr.bf16.mxu0 0
      %876 = vmatpush1.bf16.msra.mxu0 0
      %877 = vmatprep.subr.bf16.mxu0 0
      %878 = vmatpush1.bf16.msra.mxu0 0
      %879 = vmatprep.subr.bf16.mxu0 0
      %880 = vmatpush1.bf16.msra.mxu0 0
      %881 = vmatprep.mubr.bf16.mxu0 0
      %882 = vmatmul.mubr.bf16.gmra.mrb[0].mxu0 %v299
      %v883 = vpop.f32.mrb[0].mxu0
      %v884 = vadd.f32 0.0, %v883
      %v885 = vpop.f32.mrb[0].mxu0
      %v886 = vpop.f32.mrb[0].mxu0
      %v887 = vadd.f32 0.0, %v886
      %v888 = vpop.f32.mrb[0].mxu0
      %889 = vdwg.mxu0
      %v890 = vpack.c.bf16 %v887, %v884
      %v892 = vunpack.c.l.b16 %v890
      %v893 = vunpack.c.h.b16 %v890
      %v894 = vpack.c.b16 %v892, %v892
      %v895 = vpack.c.b16 %v893, %v893
      %s898 = scalar_lea.vmem %s276, 16
      %899 = vst.msk [vmem:[%s898] sm:$0xf] %vm350, %v894
      %900 = vst.msk [vmem:[%s898 + $0x4] sm:$0xf] %vm350, %v895
      %s901 = scalar_lea.vmem %s1, 48
      %v902 = vld [vmem:[%s901] sm:$0xf]
      %v903 = vld [vmem:[%s901 + $0x4] sm:$0xf]
      %v904 = vld [vmem:[%s901 + $0x8] sm:$0xf]
      %v905 = vld [vmem:[%s901 + $0xc] sm:$0xf]
      %v910 = vunpack.c.l.b16 %v902
      %v911 = vunpack.c.l.b16 %v903
      %v912 = vunpack.c.l.b16 %v904
      %v913 = vunpack.c.l.b16 %v905
      %v914 = vpack.c.b16 %v911, %v910
      %v915 = vpack.c.b16 %v913, %v912
      %918 = vmatprep.subr.bf16.mxu0 0
      %919 = vmatpush1.bf16.msra.mxu0 %v914
      %920 = vmatprep.subr.bf16.mxu0 0
      %921 = vmatpush1.bf16.msra.mxu0 %v915
      %922 = vmatprep.subr.bf16.mxu0 0
      %923 = vmatpush1.bf16.msra.mxu0 0
      %924 = vmatprep.subr.bf16.mxu0 0
      %925 = vmatpush1.bf16.msra.mxu0 0
      %926 = vmatprep.subr.bf16.mxu0 0
      %927 = vmatpush1.bf16.msra.mxu0 0
      %928 = vmatprep.subr.bf16.mxu0 0
      %929 = vmatpush1.bf16.msra.mxu0 0
      %930 = vmatprep.subr.bf16.mxu0 0
      %931 = vmatpush1.bf16.msra.mxu0 0
      %932 = vmatprep.subr.bf16.mxu0 0
      %933 = vmatpush1.bf16.msra.mxu0 0
      %934 = vmatprep.subr.bf16.mxu0 0
      %935 = vmatpush1.bf16.msra.mxu0 0
      %936 = vmatprep.subr.bf16.mxu0 0
      %937 = vmatpush1.bf16.msra.mxu0 0
      %938 = vmatprep.subr.bf16.mxu0 0
      %939 = vmatpush1.bf16.msra.mxu0 0
      %940 = vmatprep.subr.bf16.mxu0 0
      %941 = vmatpush1.bf16.msra.mxu0 0
      %942 = vmatprep.subr.bf16.mxu0 0
      %943 = vmatpush1.bf16.msra.mxu0 0
      %944 = vmatprep.subr.bf16.mxu0 0
      %945 = vmatpush1.bf16.msra.mxu0 0
      %946 = vmatprep.subr.bf16.mxu0 0
      %947 = vmatpush1.bf16.msra.mxu0 0
      %948 = vmatprep.subr.bf16.mxu0 0
      %949 = vmatpush1.bf16.msra.mxu0 0
      %950 = vmatprep.mubr.bf16.mxu0 0
      %951 = vmatmul.mubr.bf16.gmra.mrb[0].mxu0 %v299
      %v952 = vpop.f32.mrb[0].mxu0
      %v953 = vadd.f32 0.0, %v952
      %v954 = vpop.f32.mrb[0].mxu0
      %v955 = vpop.f32.mrb[0].mxu0
      %v956 = vadd.f32 0.0, %v955
      %v957 = vpop.f32.mrb[0].mxu0
      %958 = vdwg.mxu0
      %v959 = vpack.c.bf16 %v956, %v953
      %v961 = vunpack.c.l.b16 %v959
      %v962 = vunpack.c.h.b16 %v959
      %v963 = vpack.c.b16 %v961, %v961
      %v964 = vpack.c.b16 %v962, %v962
      %s967 = scalar_lea.vmem %s266, 24
      %968 = vst.msk [vmem:[%s967] sm:$0xf] %vm350, %v963
      %969 = vst.msk [vmem:[%s967 + $0x4] sm:$0xf] %vm350, %v964
      %s970 = scalar_lea.vmem %s2, 48
      %v971 = vld [vmem:[%s970] sm:$0xf]
      %v972 = vld [vmem:[%s970 + $0x4] sm:$0xf]
      %v973 = vld [vmem:[%s970 + $0x8] sm:$0xf]
      %v974 = vld [vmem:[%s970 + $0xc] sm:$0xf]
      %v979 = vunpack.c.l.b16 %v971
      %v980 = vunpack.c.l.b16 %v972
      %v981 = vunpack.c.l.b16 %v973
      %v982 = vunpack.c.l.b16 %v974
      %v983 = vpack.c.b16 %v980, %v979
      %v984 = vpack.c.b16 %v982, %v981
      %987 = vmatprep.subr.bf16.mxu0 0
      %988 = vmatpush1.bf16.msra.mxu0 %v983
      %989 = vmatprep.subr.bf16.mxu0 0
      %990 = vmatpush1.bf16.msra.mxu0 %v984
      %991 = vmatprep.subr.bf16.mxu0 0
      %992 = vmatpush1.bf16.msra.mxu0 0
      %993 = vmatprep.subr.bf16.mxu0 0
      %994 = vmatpush1.bf16.msra.mxu0 0
      %995 = vmatprep.subr.bf16.mxu0 0
      %996 = vmatpush1.bf16.msra.mxu0 0
      %997 = vmatprep.subr.bf16.mxu0 0
      %998 = vmatpush1.bf16.msra.mxu0 0
      %999 = vmatprep.subr.bf16.mxu0 0
      %1000 = vmatpush1.bf16.msra.mxu0 0
      %1001 = vmatprep.subr.bf16.mxu0 0
      %1002 = vmatpush1.bf16.msra.mxu0 0
      %1003 = vmatprep.subr.bf16.mxu0 0
      %1004 = vmatpush1.bf16.msra.mxu0 0
      %1005 = vmatprep.subr.bf16.mxu0 0
      %1006 = vmatpush1.bf16.msra.mxu0 0
      %1007 = vmatprep.subr.bf16.mxu0 0
      %1008 = vmatpush1.bf16.msra.mxu0 0
      %1009 = vmatprep.subr.bf16.mxu0 0
      %1010 = vmatpush1.bf16.msra.mxu0 0
      %1011 = vmatprep.subr.bf16.mxu0 0
      %1012 = vmatpush1.bf16.msra.mxu0 0
      %1013 = vmatprep.subr.bf16.mxu0 0
      %1014 = vmatpush1.bf16.msra.mxu0 0
      %1015 = vmatprep.subr.bf16.mxu0 0
      %1016 = vmatpush1.bf16.msra.mxu0 0
      %1017 = vmatprep.subr.bf16.mxu0 0
      %1018 = vmatpush1.bf16.msra.mxu0 0
      %1019 = vmatprep.mubr.bf16.mxu0 0
      %1020 = vmatmul.mubr.bf16.gmra.mrb[0].mxu0 %v299
      %v1021 = vpop.f32.mrb[0].mxu0
      %v1022 = vadd.f32 0.0, %v1021
      %v1023 = vpop.f32.mrb[0].mxu0
      %v1024 = vpop.f32.mrb[0].mxu0
      %v1025 = vadd.f32 0.0, %v1024
      %v1026 = vpop.f32.mrb[0].mxu0
      %1027 = vdwg.mxu0
      %v1028 = vpack.c.bf16 %v1025, %v1022
      %v1030 = vunpack.c.l.b16 %v1028
      %v1031 = vunpack.c.h.b16 %v1028
      %v1032 = vpack.c.b16 %v1030, %v1030
      %v1033 = vpack.c.b16 %v1031, %v1031
      %s1036 = scalar_lea.vmem %s271, 24
      %1037 = vst.msk [vmem:[%s1036] sm:$0xf] %vm350, %v1032
      %1038 = vst.msk [vmem:[%s1036 + $0x4] sm:$0xf] %vm350, %v1033
      %s1039 = scalar_lea.vmem %s3, 48
      %v1040 = vld [vmem:[%s1039] sm:$0xf]
      %v1041 = vld [vmem:[%s1039 + $0x4] sm:$0xf]
      %v1042 = vld [vmem:[%s1039 + $0x8] sm:$0xf]
      %v1043 = vld [vmem:[%s1039 + $0xc] sm:$0xf]
      %v1048 = vunpack.c.l.b16 %v1040
      %v1049 = vunpack.c.l.b16 %v1041
      %v1050 = vunpack.c.l.b16 %v1042
      %v1051 = vunpack.c.l.b16 %v1043
      %v1052 = vpack.c.b16 %v1049, %v1048
      %v1053 = vpack.c.b16 %v1051, %v1050
      %1056 = vmatprep.subr.bf16.mxu0 0
      %1057 = vmatpush1.bf16.msra.mxu0 %v1052
      %1058 = vmatprep.subr.bf16.mxu0 0
      %1059 = vmatpush1.bf16.msra.mxu0 %v1053
      %1060 = vmatprep.subr.bf16.mxu0 0
      %1061 = vmatpush1.bf16.msra.mxu0 0
      %1062 = vmatprep.subr.bf16.mxu0 0
      %1063 = vmatpush1.bf16.msra.mxu0 0
      %1064 = vmatprep.subr.bf16.mxu0 0
      %1065 = vmatpush1.bf16.msra.mxu0 0
      %1066 = vmatprep.subr.bf16.mxu0 0
      %1067 = vmatpush1.bf16.msra.mxu0 0
      %1068 = vmatprep.subr.bf16.mxu0 0
      %1069 = vmatpush1.bf16.msra.mxu0 0
      %1070 = vmatprep.subr.bf16.mxu0 0
      %1071 = vmatpush1.bf16.msra.mxu0 0
      %1072 = vmatprep.subr.bf16.mxu0 0
      %1073 = vmatpush1.bf16.msra.mxu0 0
      %1074 = vmatprep.subr.bf16.mxu0 0
      %1075 = vmatpush1.bf16.msra.mxu0 0
      %1076 = vmatprep.subr.bf16.mxu0 0
      %1077 = vmatpush1.bf16.msra.mxu0 0
      %1078 = vmatprep.subr.bf16.mxu0 0
      %1079 = vmatpush1.bf16.msra.mxu0 0
      %1080 = vmatprep.subr.bf16.mxu0 0
      %1081 = vmatpush1.bf16.msra.mxu0 0
      %1082 = vmatprep.subr.bf16.mxu0 0
      %1083 = vmatpush1.bf16.msra.mxu0 0
      %1084 = vmatprep.subr.bf16.mxu0 0
      %1085 = vmatpush1.bf16.msra.mxu0 0
      %1086 = vmatprep.subr.bf16.mxu0 0
      %1087 = vmatpush1.bf16.msra.mxu0 0
      %1088 = vmatprep.mubr.bf16.mxu0 0
      %1089 = vmatmul.mubr.bf16.gmra.mrb[0].mxu0 %v299
      %v1090 = vpop.f32.mrb[0].mxu0
      %v1091 = vadd.f32 0.0, %v1090
      %v1092 = vpop.f32.mrb[0].mxu0
      %v1093 = vpop.f32.mrb[0].mxu0
      %v1094 = vadd.f32 0.0, %v1093
      %v1095 = vpop.f32.mrb[0].mxu0
      %1096 = vdwg.mxu0
      %v1097 = vpack.c.bf16 %v1094, %v1091
      %v1099 = vunpack.c.l.b16 %v1097
      %v1100 = vunpack.c.h.b16 %v1097
      %v1101 = vpack.c.b16 %v1099, %v1099
      %v1102 = vpack.c.b16 %v1100, %v1100
      %s1105 = scalar_lea.vmem %s276, 24
      %1106 = vst.msk [vmem:[%s1105] sm:$0xf] %vm350, %v1101
      %1107 = vst.msk [vmem:[%s1105 + $0x4] sm:$0xf] %vm350, %v1102
      %p1108 = scmp.lt.s32.totalorder %s18, 3
      %s1109 = scalar_select %p1108, %s18, 3
      %s1110 = smul.addr %s1109, 8
      %s1111 = smul.addr %s1110, 4
      %s1112 = scalar_lea.vmem %s4, %s1111
      %p1113 = scmp.lt.s32.totalorder %s18, 3
      %s1114 = scalar_select %p1113, %s18, 3
      %s1115 = smul.addr %s1114, 8
      %s1116 = smul.addr %s1115, 4
      %s1117 = scalar_lea.vmem %s5, %s1116
      %p1118 = scmp.lt.s32.totalorder %s18, 3
      %s1119 = scalar_select %p1118, %s18, 3
      %s1120 = smul.addr %s1119, 8
      %s1121 = smul.addr %s1120, 4
      %s1122 = scalar_lea.vmem %s6, %s1121
      // Predicated region
      $region37: #{fwd.3} parent=35 // pred_check
        %p1123 = pneg %p125
      $region38: #{fwd.3} parent=35 // pred_check_branch
        %1125 = sbr.rel (%p1123) target = $region40
      $region39: #{fwd.3} parent=35 // pred_region
        _
      $region40: #{fwd.3} parent=35 // pred_fallthru
        _
      // Predicated region
      $region41: #{fwd.3} parent=35 // pred_check
        %p1126 = pneg %p151
      $region42: #{fwd.3} parent=35 // pred_check_branch
        %1128 = sbr.rel (%p1126) target = $region44
      $region43: #{fwd.3} parent=35 // pred_region
        _
      $region44: #{fwd.3} parent=35 // pred_fallthru
        _
      // Predicated region
      $region45: #{fwd.3} parent=35 // pred_check
        %p1129 = pneg %p177
      $region46: #{fwd.3} parent=35 // pred_check_branch
        %1131 = sbr.rel (%p1129) target = $region48
      $region47: #{fwd.3} parent=35 // pred_region
        _
      $region48: #{fwd.3} parent=35 // pred_fallthru
        _
    $region36: #{fwd.3} parent=5 // pred_fallthru
      _
    %p1132 = scmp.le.s32.totalorder 2, %s13
    // Predicated region
    $region49: #{fwd.3} parent=5 // pred_check
      %p1133 = pneg %p1132
    $region50: #{fwd.3} parent=5 // pred_check_branch
      %1135 = sbr.rel (%p1133) target = $region52
    $region51: #{fwd.3} parent=5 // pred_region
      %s1136 = ssub.s32 %s13, 2
      // Predicated region
      $region53: #{fwd.3} parent=51 // pred_check
        %p1137 = pneg %p131
      $region54: #{fwd.3} parent=51 // pred_check_branch
        %1139 = sbr.rel (%p1137) target = $region56
      $region55: #{fwd.3} parent=51 // pred_region
        %p1140 = scmp.lt.s32.totalorder %s19, 3
        %s1141 = scalar_select %p1140, %s19, 3
        %s1142 = smul.addr %s1141, 8
        %s1143 = smul.addr %s1142, 4
        %s1144 = scalar_lea.vmem %s4, %s1143
      $region56: #{fwd.3} parent=51 // pred_fallthru
        _
      // Predicated region
      $region57: #{fwd.3} parent=51 // pred_check
        %p1145 = pneg %p157
      $region58: #{fwd.3} parent=51 // pred_check_branch
        %1147 = sbr.rel (%p1145) target = $region60
      $region59: #{fwd.3} parent=51 // pred_region
        %p1148 = scmp.lt.s32.totalorder %s19, 3
        %s1149 = scalar_select %p1148, %s19, 3
        %s1150 = smul.addr %s1149, 8
        %s1151 = smul.addr %s1150, 4
        %s1152 = scalar_lea.vmem %s5, %s1151
      $region60: #{fwd.3} parent=51 // pred_fallthru
        _
      // Predicated region
      $region61: #{fwd.3} parent=51 // pred_check
        %p1153 = pneg %p183
      $region62: #{fwd.3} parent=51 // pred_check_branch
        %1155 = sbr.rel (%p1153) target = $region64
      $region63: #{fwd.3} parent=51 // pred_region
        %p1156 = scmp.lt.s32.totalorder %s19, 3
        %s1157 = scalar_select %p1156, %s19, 3
        %s1158 = smul.addr %s1157, 8
        %s1159 = smul.addr %s1158, 4
        %s1160 = scalar_lea.vmem %s6, %s1159
      $region64: #{fwd.3} parent=51 // pred_fallthru
        _
    $region52: #{fwd.3} parent=5 // pred_fallthru
      _
  $region6: #{fwd.3} parent=0 // loop_footer
    %s17 = sadd.s32 1, %s13
  $region7: #{fwd.3} parent=0 // loop_footer_branch
    %12 = sbr.rel target = $region3
  $region8: #{fwd.3} parent=0 // loop_exit
    _

</llo_original>
